<compile_context>
chip_gen: v6e
topology: v6e:2x2x1
jax: 0.10.0
libtpu: 0.0.40
codegen_flags: <defaults>
</compile_context>

<pallas_src>
import functools

import jax
import jax.numpy as jnp
import numpy as np
from jax.experimental import pallas as pl
from jax.experimental.pallas import tpu as pltpu


def _lstm_fc_kernel(num_layers, hidden_size, T, Bp, x_ref, *refs):
    """Whole forward pass in one kernel invocation (no grid).

    refs = [w_ih_T_0, w_hh_T_0, b_0, ..., w_ih_T_{L-1}, w_hh_T_{L-1}, b_{L-1},
            fc_w_T_pad, fc_b_pad, out_ref]
    Row layout of x_ref: row = t*Bp + b (time-major, batch padded to Bp).
    Gate column order matches PyTorch: i, f, g, o.
    """
    H = hidden_size
    n_w = 3 * num_layers
    layer_refs = refs[:n_w]
    fc_w_ref = refs[n_w]          # (H, Kp)   lane-dense padded
    fc_b_ref = refs[n_w + 1]      # (1, Kp)
    out_ref = refs[n_w + 2]       # (Bp, Kp)

    # ---- hoisted layer-0 input projection for the whole sequence, biases folded ----
    w_ih0 = layer_refs[0][...]                        # (I, 4H)
    b0 = layer_refs[2][...]                           # (1, 4H) = b_ih + b_hh
    x_all = x_ref[...]                                # (T*Bp, I)
    if x_all.shape[1] == 1:
        # input_size == 1: broadcast multiply instead of a degenerate matmul
        pre0 = x_all * w_ih0 + b0                     # (T*Bp, 4H)
    else:
        pre0 = jnp.dot(x_all, w_ih0, preferred_element_type=jnp.float32) + b0

    # Per-layer weights loaded once (small: a handful of vregs each).
    w_hh = [layer_refs[3 * l + 1][...] for l in range(num_layers)]      # (H, 4H)
    w_ih = [None] + [layer_refs[3 * l][...] for l in range(1, num_layers)]       # (H, 4H)
    b_l = [None] + [layer_refs[3 * l + 2][...] for l in range(1, num_layers)]    # (1, 4H)

    h = [jnp.zeros((Bp, H), jnp.float32) for _ in range(num_layers)]
    c = [jnp.zeros((Bp, H), jnp.float32) for _ in range(num_layers)]

    def cell(gates, c_prev):
        # Slice first (needed for extraction anyway), then narrow EUP passes:
        # 5*B*H transcendental elements per step instead of 9*B*H.
        i_g = jax.nn.sigmoid(gates[:, 0 * H:1 * H])
        f_g = jax.nn.sigmoid(gates[:, 1 * H:2 * H])
        g_g = jnp.tanh(gates[:, 2 * H:3 * H])
        o_g = jax.nn.sigmoid(gates[:, 3 * H:4 * H])
        c_new = f_g * c_prev + i_g * g_g
        h_new = o_g * jnp.tanh(c_new)
        return h_new, c_new

    # Fully-unrolled wavefront: layer l step t depends only on (l-1, t) and (l, t-1),
    # so layer-1 step t and layer-0 step t+1 are independent and can be interleaved by
    # the scheduler.  One MXU matmul per (step, layer) for the recurrence (+1 small
    # input-projection matmul per step for layers >= 1).
    for t in range(T):
        pre_t = pre0[t * Bp:(t + 1) * Bp, :]          # aligned (8, 4H) slice
        for l in range(num_layers):
            if l == 0:
                gates = pre_t + jnp.dot(h[0], w_hh[0],
                                        preferred_element_type=jnp.float32)
            else:
                gates = (jnp.dot(h[l - 1], w_ih[l], preferred_element_type=jnp.float32)
                         + b_l[l]
                         + jnp.dot(h[l], w_hh[l], preferred_element_type=jnp.float32))
            h[l], c[l] = cell(gates, c[l])

    # fc(out[:, -1, :]) -- lane-dense (padded) output, full-sublane (Bp=8) store.
    out_ref[...] = (jnp.dot(h[num_layers - 1], fc_w_ref[...],
                            preferred_element_type=jnp.float32) + fc_b_ref[...])


def prepare_params(params, hidden_size, num_layers):
    """One-time parameter preprocessing (transposes, bias folding, FC lane padding)."""
    H = hidden_size
    prepped = []
    for l in range(num_layers):
        w_ih, w_hh, b_ih, b_hh = params[f"layer{l}"]
        prepped += [jnp.asarray(w_ih.T, jnp.float32),
                    jnp.asarray(w_hh.T, jnp.float32),
                    jnp.asarray((b_ih + b_hh)[None, :], jnp.float32)]
    fc_w, fc_b = params["fc"]
    K = fc_w.shape[0]
    Kp = max(128, ((K + 127) // 128) * 128)           # lane-dense padded output width
    fc_w_pad = jnp.zeros((H, Kp), jnp.float32).at[:, :K].set(fc_w.T)
    fc_b_pad = jnp.zeros((1, Kp), jnp.float32).at[:, :K].set(fc_b)
    prepped += [fc_w_pad, fc_b_pad]
    return tuple(prepped), K, Kp


@functools.partial(jax.jit, static_argnums=(2, 3, 4, 5))
def _forward_impl(x, prepped, hidden_size, num_layers, K, Kp):
    B, T, I = x.shape
    Bp = max(8, ((B + 7) // 8) * 8)                   # pad batch to a full sublane tile
    # time-major, batch-padded, flat layout: row = t*Bp + b
    x_tm = jnp.transpose(x, (1, 0, 2))                # (T, B, I)
    x_pad = jnp.zeros((T, Bp, I), jnp.float32).at[:, :B, :].set(x_tm)
    x2d = x_pad.reshape(T * Bp, I)

    kernel = functools.partial(_lstm_fc_kernel, num_layers, hidden_size, T, Bp)
    out_pad = pl.pallas_call(
        kernel,
        out_shape=jax.ShapeDtypeStruct((Bp, Kp), jnp.float32),
        in_specs=[pl.BlockSpec(memory_space=pltpu.MemorySpace.VMEM)] * (1 + len(prepped)),
        out_specs=pl.BlockSpec(memory_space=pltpu.MemorySpace.VMEM),
    )(x2d, *prepped)
    return out_pad[:B, :K]


def lstm_fc_forward(x, prepped, hidden_size, num_layers, K, Kp):
    """x: (B, T, input_size) float32, batch-first (matches the PyTorch module)."""
    return _forward_impl(x, prepped, hidden_size, num_layers, K, Kp)


def reference_forward(x, params, hidden_size, num_layers):
    """Pure-JAX reference mirroring torch.nn.LSTM + nn.Linear semantics."""
    B, T, _ = x.shape
    H = hidden_size
    layer_in = x
    for l in range(num_layers):
        w_ih, w_hh, b_ih, b_hh = params[f"layer{l}"]
        h = jnp.zeros((B, H), jnp.float32)
        c = jnp.zeros((B, H), jnp.float32)
        outs = []
        for t in range(T):
            gates = layer_in[:, t, :] @ w_ih.T + h @ w_hh.T + b_ih + b_hh
            i = jax.nn.sigmoid(gates[:, :H])
            f = jax.nn.sigmoid(gates[:, H:2 * H])
            g = jnp.tanh(gates[:, 2 * H:3 * H])
            o = jax.nn.sigmoid(gates[:, 3 * H:])
            c = f * c + i * g
            h = o * jnp.tanh(c)
            outs.append(h)
        layer_in = jnp.stack(outs, axis=1)
    fc_w, fc_b = params["fc"]
    return layer_in[:, -1, :] @ fc_w.T + fc_b


if __name__ == "__main__":
    # Shapes consistent with the module: input_size=1 (fixed in app.py),
    # batch=2, seq=8, hidden_size=32, num_layers=2, num_keys=10.
    B, T, I = 2, 8, 1
    H, L, K = 32, 2, 10

    key = jax.random.PRNGKey(0)
    keys = jax.random.split(key, 4 * L + 3)
    scale = 1.0 / np.sqrt(H)                          # PyTorch-style uniform(-1/sqrt(H), 1/sqrt(H))

    params = {}
    ki = 0
    for l in range(L):
        d = I if l == 0 else H
        w_ih = jax.random.uniform(keys[ki], (4 * H, d), jnp.float32, -scale, scale); ki += 1
        w_hh = jax.random.uniform(keys[ki], (4 * H, H), jnp.float32, -scale, scale); ki += 1
        b_ih = jax.random.uniform(keys[ki], (4 * H,), jnp.float32, -scale, scale); ki += 1
        b_hh = jax.random.uniform(keys[ki], (4 * H,), jnp.float32, -scale, scale); ki += 1
        params[f"layer{l}"] = (w_ih, w_hh, b_ih, b_hh)
    fc_w = jax.random.uniform(keys[ki], (K, H), jnp.float32, -scale, scale); ki += 1
    fc_b = jax.random.uniform(keys[ki], (K,), jnp.float32, -scale, scale); ki += 1
    params["fc"] = (fc_w, fc_b)

    x = jax.random.normal(keys[ki], (B, T, I), jnp.float32)

    # One-time parameter prep (hoisted out of the per-call path), then the jitted forward.
    prepped, num_keys, Kp = prepare_params(params, H, L)
    out = lstm_fc_forward(x, prepped, H, L, num_keys, Kp)
    out = jax.block_until_ready(out)

    ref = reference_forward(x, params, H, L)
    assert out.shape == (B, K)
    assert np.allclose(np.asarray(out), np.asarray(ref), atol=1e-4, rtol=1e-4)

    print("KERNEL_OK")
</pallas_src>

<mosaic_0001>
module attributes {stable_mosaic.version = 11 : i64} {
  func.func @_lstm_fc_kernel(%arg0: memref<64x1xf32, #tpu.memory_space<vmem>>, %arg1: memref<1x128xf32, #tpu.memory_space<vmem>>, %arg2: memref<32x128xf32, #tpu.memory_space<vmem>>, %arg3: memref<1x128xf32, #tpu.memory_space<vmem>>, %arg4: memref<32x128xf32, #tpu.memory_space<vmem>>, %arg5: memref<32x128xf32, #tpu.memory_space<vmem>>, %arg6: memref<1x128xf32, #tpu.memory_space<vmem>>, %arg7: memref<32x128xf32, #tpu.memory_space<vmem>>, %arg8: memref<1x128xf32, #tpu.memory_space<vmem>>, %arg9: memref<8x128xf32, #tpu.memory_space<vmem>>) attributes {dimension_semantics = [], scalar_prefetch = 0 : i64, scratch_operands = 0 : i64, tpu.core_type = #tpu.core_type<tc>} {
    %c0 = arith.constant 0 : index
    %c0_0 = arith.constant 0 : index
    %0 = vector.load %arg1[%c0, %c0_0] : memref<1x128xf32, #tpu.memory_space<vmem>>, vector<1x128xf32>
    %c0_1 = arith.constant 0 : index
    %c0_2 = arith.constant 0 : index
    %1 = vector.load %arg3[%c0_1, %c0_2] : memref<1x128xf32, #tpu.memory_space<vmem>>, vector<1x128xf32>
    %c0_3 = arith.constant 0 : index
    %c0_4 = arith.constant 0 : index
    %2 = vector.load %arg0[%c0_3, %c0_4] : memref<64x1xf32, #tpu.memory_space<vmem>>, vector<64x1xf32>
    %3 = vector.broadcast %2 : vector<64x1xf32> to vector<64x128xf32>
    %4 = vector.broadcast %0 : vector<1x128xf32> to vector<64x128xf32>
    %5 = arith.mulf %3, %4 : vector<64x128xf32>
    %6 = vector.broadcast %1 : vector<1x128xf32> to vector<64x128xf32>
    %7 = arith.addf %5, %6 : vector<64x128xf32>
    %c0_5 = arith.constant 0 : index
    %c0_6 = arith.constant 0 : index
    %8 = vector.load %arg2[%c0_5, %c0_6] : memref<32x128xf32, #tpu.memory_space<vmem>>, vector<32x128xf32>
    %c0_7 = arith.constant 0 : index
    %c0_8 = arith.constant 0 : index
    %9 = vector.load %arg5[%c0_7, %c0_8] : memref<32x128xf32, #tpu.memory_space<vmem>>, vector<32x128xf32>
    %c0_9 = arith.constant 0 : index
    %c0_10 = arith.constant 0 : index
    %10 = vector.load %arg4[%c0_9, %c0_10] : memref<32x128xf32, #tpu.memory_space<vmem>>, vector<32x128xf32>
    %c0_11 = arith.constant 0 : index
    %c0_12 = arith.constant 0 : index
    %11 = vector.load %arg6[%c0_11, %c0_12] : memref<1x128xf32, #tpu.memory_space<vmem>>, vector<1x128xf32>
    %cst = arith.constant 0.000000e+00 : f32
    %12 = vector.broadcast %cst : f32 to vector<8x32xf32>
    %cst_13 = arith.constant 0.000000e+00 : f32
    %13 = vector.broadcast %cst_13 : f32 to vector<8x32xf32>
    %cst_14 = arith.constant 0.000000e+00 : f32
    %14 = vector.broadcast %cst_14 : f32 to vector<8x32xf32>
    %cst_15 = arith.constant 0.000000e+00 : f32
    %15 = vector.broadcast %cst_15 : f32 to vector<8x32xf32>
    %16 = vector.extract_strided_slice %7 {offsets = [0, 0], sizes = [8, 128], strides = [1, 1]} : vector<64x128xf32> to vector<8x128xf32>
    %cst_16 = arith.constant dense<0.000000e+00> : vector<8x128xf32>
    %17 = tpu.matmul %12, %8, %cst_16 {dimension_numbers = #tpu.dot_dimension_numbers<[1], [0], [0], [1], [0, 0, 1, 1], [], []>} : vector<8x32xf32>, vector<32x128xf32>, vector<8x128xf32> -> vector<8x128xf32>
    %18 = arith.addf %16, %17 : vector<8x128xf32>
    %19 = vector.extract_strided_slice %18 {offsets = [0, 0], sizes = [8, 32], strides = [1, 1]} : vector<8x128xf32> to vector<8x32xf32>
    %20 = arith.negf %19 : vector<8x32xf32>
    %21 = math.exp %20 : vector<8x32xf32>
    %cst_17 = arith.constant 1.000000e+00 : f32
    %22 = vector.broadcast %cst_17 : f32 to vector<8x32xf32>
    %23 = arith.addf %22, %21 : vector<8x32xf32>
    %24 = arith.divf %22, %23 : vector<8x32xf32>
    %25 = vector.extract_strided_slice %18 {offsets = [0, 32], sizes = [8, 32], strides = [1, 1]} : vector<8x128xf32> to vector<8x32xf32>
    %26 = arith.negf %25 : vector<8x32xf32>
    %27 = math.exp %26 : vector<8x32xf32>
    %cst_18 = arith.constant 1.000000e+00 : f32
    %28 = vector.broadcast %cst_18 : f32 to vector<8x32xf32>
    %29 = arith.addf %28, %27 : vector<8x32xf32>
    %30 = arith.divf %28, %29 : vector<8x32xf32>
    %31 = vector.extract_strided_slice %18 {offsets = [0, 64], sizes = [8, 32], strides = [1, 1]} : vector<8x128xf32> to vector<8x32xf32>
    %32 = math.tanh %31 : vector<8x32xf32>
    %33 = vector.extract_strided_slice %18 {offsets = [0, 96], sizes = [8, 32], strides = [1, 1]} : vector<8x128xf32> to vector<8x32xf32>
    %34 = arith.negf %33 : vector<8x32xf32>
    %35 = math.exp %34 : vector<8x32xf32>
    %cst_19 = arith.constant 1.000000e+00 : f32
    %36 = vector.broadcast %cst_19 : f32 to vector<8x32xf32>
    %37 = arith.addf %36, %35 : vector<8x32xf32>
    %38 = arith.divf %36, %37 : vector<8x32xf32>
    %39 = arith.mulf %30, %14 : vector<8x32xf32>
    %40 = arith.mulf %24, %32 : vector<8x32xf32>
    %41 = arith.addf %39, %40 : vector<8x32xf32>
    %42 = math.tanh %41 : vector<8x32xf32>
    %43 = arith.mulf %38, %42 : vector<8x32xf32>
    %cst_20 = arith.constant dense<0.000000e+00> : vector<8x128xf32>
    %44 = tpu.matmul %43, %10, %cst_20 {dimension_numbers = #tpu.dot_dimension_numbers<[1], [0], [0], [1], [0, 0, 1, 1], [], []>} : vector<8x32xf32>, vector<32x128xf32>, vector<8x128xf32> -> vector<8x128xf32>
    %45 = vector.broadcast %11 : vector<1x128xf32> to vector<8x128xf32>
    %46 = arith.addf %44, %45 : vector<8x128xf32>
    %cst_21 = arith.constant dense<0.000000e+00> : vector<8x128xf32>
    %47 = tpu.matmul %13, %9, %cst_21 {dimension_numbers = #tpu.dot_dimension_numbers<[1], [0], [0], [1], [0, 0, 1, 1], [], []>} : vector<8x32xf32>, vector<32x128xf32>, vector<8x128xf32> -> vector<8x128xf32>
    %48 = arith.addf %46, %47 : vector<8x128xf32>
    %49 = vector.extract_strided_slice %48 {offsets = [0, 0], sizes = [8, 32], strides = [1, 1]} : vector<8x128xf32> to vector<8x32xf32>
    %50 = arith.negf %49 : vector<8x32xf32>
    %51 = math.exp %50 : vector<8x32xf32>
    %cst_22 = arith.constant 1.000000e+00 : f32
    %52 = vector.broadcast %cst_22 : f32 to vector<8x32xf32>
    %53 = arith.addf %52, %51 : vector<8x32xf32>
    %54 = arith.divf %52, %53 : vector<8x32xf32>
    %55 = vector.extract_strided_slice %48 {offsets = [0, 32], sizes = [8, 32], strides = [1, 1]} : vector<8x128xf32> to vector<8x32xf32>
    %56 = arith.negf %55 : vector<8x32xf32>
    %57 = math.exp %56 : vector<8x32xf32>
    %cst_23 = arith.constant 1.000000e+00 : f32
    %58 = vector.broadcast %cst_23 : f32 to vector<8x32xf32>
    %59 = arith.addf %58, %57 : vector<8x32xf32>
    %60 = arith.divf %58, %59 : vector<8x32xf32>
    %61 = vector.extract_strided_slice %48 {offsets = [0, 64], sizes = [8, 32], strides = [1, 1]} : vector<8x128xf32> to vector<8x32xf32>
    %62 = math.tanh %61 : vector<8x32xf32>
    %63 = vector.extract_strided_slice %48 {offsets = [0, 96], sizes = [8, 32], strides = [1, 1]} : vector<8x128xf32> to vector<8x32xf32>
    %64 = arith.negf %63 : vector<8x32xf32>
    %65 = math.exp %64 : vector<8x32xf32>
    %cst_24 = arith.constant 1.000000e+00 : f32
    %66 = vector.broadcast %cst_24 : f32 to vector<8x32xf32>
    %67 = arith.addf %66, %65 : vector<8x32xf32>
    %68 = arith.divf %66, %67 : vector<8x32xf32>
    %69 = arith.mulf %60, %15 : vector<8x32xf32>
    %70 = arith.mulf %54, %62 : vector<8x32xf32>
    %71 = arith.addf %69, %70 : vector<8x32xf32>
    %72 = math.tanh %71 : vector<8x32xf32>
    %73 = arith.mulf %68, %72 : vector<8x32xf32>
    %74 = vector.extract_strided_slice %7 {offsets = [8, 0], sizes = [8, 128], strides = [1, 1]} : vector<64x128xf32> to vector<8x128xf32>
    %cst_25 = arith.constant dense<0.000000e+00> : vector<8x128xf32>
    %75 = tpu.matmul %43, %8, %cst_25 {dimension_numbers = #tpu.dot_dimension_numbers<[1], [0], [0], [1], [0, 0, 1, 1], [], []>} : vector<8x32xf32>, vector<32x128xf32>, vector<8x128xf32> -> vector<8x128xf32>
    %76 = arith.addf %74, %75 : vector<8x128xf32>
    %77 = vector.extract_strided_slice %76 {offsets = [0, 0], sizes = [8, 32], strides = [1, 1]} : vector<8x128xf32> to vector<8x32xf32>
    %78 = arith.negf %77 : vector<8x32xf32>
    %79 = math.exp %78 : vector<8x32xf32>
    %cst_26 = arith.constant 1.000000e+00 : f32
    %80 = vector.broadcast %cst_26 : f32 to vector<8x32xf32>
    %81 = arith.addf %80, %79 : vector<8x32xf32>
    %82 = arith.divf %80, %81 : vector<8x32xf32>
    %83 = vector.extract_strided_slice %76 {offsets = [0, 32], sizes = [8, 32], strides = [1, 1]} : vector<8x128xf32> to vector<8x32xf32>
    %84 = arith.negf %83 : vector<8x32xf32>
    %85 = math.exp %84 : vector<8x32xf32>
    %cst_27 = arith.constant 1.000000e+00 : f32
    %86 = vector.broadcast %cst_27 : f32 to vector<8x32xf32>
    %87 = arith.addf %86, %85 : vector<8x32xf32>
    %88 = arith.divf %86, %87 : vector<8x32xf32>
    %89 = vector.extract_strided_slice %76 {offsets = [0, 64], sizes = [8, 32], strides = [1, 1]} : vector<8x128xf32> to vector<8x32xf32>
    %90 = math.tanh %89 : vector<8x32xf32>
    %91 = vector.extract_strided_slice %76 {offsets = [0, 96], sizes = [8, 32], strides = [1, 1]} : vector<8x128xf32> to vector<8x32xf32>
    %92 = arith.negf %91 : vector<8x32xf32>
    %93 = math.exp %92 : vector<8x32xf32>
    %cst_28 = arith.constant 1.000000e+00 : f32
    %94 = vector.broadcast %cst_28 : f32 to vector<8x32xf32>
    %95 = arith.addf %94, %93 : vector<8x32xf32>
    %96 = arith.divf %94, %95 : vector<8x32xf32>
    %97 = arith.mulf %88, %41 : vector<8x32xf32>
    %98 = arith.mulf %82, %90 : vector<8x32xf32>
    %99 = arith.addf %97, %98 : vector<8x32xf32>
    %100 = math.tanh %99 : vector<8x32xf32>
    %101 = arith.mulf %96, %100 : vector<8x32xf32>
    %cst_29 = arith.constant dense<0.000000e+00> : vector<8x128xf32>
    %102 = tpu.matmul %101, %10, %cst_29 {dimension_numbers = #tpu.dot_dimension_numbers<[1], [0], [0], [1], [0, 0, 1, 1], [], []>} : vector<8x32xf32>, vector<32x128xf32>, vector<8x128xf32> -> vector<8x128xf32>
    %103 = vector.broadcast %11 : vector<1x128xf32> to vector<8x128xf32>
    %104 = arith.addf %102, %103 : vector<8x128xf32>
    %cst_30 = arith.constant dense<0.000000e+00> : vector<8x128xf32>
    %105 = tpu.matmul %73, %9, %cst_30 {dimension_numbers = #tpu.dot_dimension_numbers<[1], [0], [0], [1], [0, 0, 1, 1], [], []>} : vector<8x32xf32>, vector<32x128xf32>, vector<8x128xf32> -> vector<8x128xf32>
    %106 = arith.addf %104, %105 : vector<8x128xf32>
    %107 = vector.extract_strided_slice %106 {offsets = [0, 0], sizes = [8, 32], strides = [1, 1]} : vector<8x128xf32> to vector<8x32xf32>
    %108 = arith.negf %107 : vector<8x32xf32>
    %109 = math.exp %108 : vector<8x32xf32>
    %cst_31 = arith.constant 1.000000e+00 : f32
    %110 = vector.broadcast %cst_31 : f32 to vector<8x32xf32>
    %111 = arith.addf %110, %109 : vector<8x32xf32>
    %112 = arith.divf %110, %111 : vector<8x32xf32>
    %113 = vector.extract_strided_slice %106 {offsets = [0, 32], sizes = [8, 32], strides = [1, 1]} : vector<8x128xf32> to vector<8x32xf32>
    %114 = arith.negf %113 : vector<8x32xf32>
    %115 = math.exp %114 : vector<8x32xf32>
    %cst_32 = arith.constant 1.000000e+00 : f32
    %116 = vector.broadcast %cst_32 : f32 to vector<8x32xf32>
    %117 = arith.addf %116, %115 : vector<8x32xf32>
    %118 = arith.divf %116, %117 : vector<8x32xf32>
    %119 = vector.extract_strided_slice %106 {offsets = [0, 64], sizes = [8, 32], strides = [1, 1]} : vector<8x128xf32> to vector<8x32xf32>
    %120 = math.tanh %119 : vector<8x32xf32>
    %121 = vector.extract_strided_slice %106 {offsets = [0, 96], sizes = [8, 32], strides = [1, 1]} : vector<8x128xf32> to vector<8x32xf32>
    %122 = arith.negf %121 : vector<8x32xf32>
    %123 = math.exp %122 : vector<8x32xf32>
    %cst_33 = arith.constant 1.000000e+00 : f32
    %124 = vector.broadcast %cst_33 : f32 to vector<8x32xf32>
    %125 = arith.addf %124, %123 : vector<8x32xf32>
    %126 = arith.divf %124, %125 : vector<8x32xf32>
    %127 = arith.mulf %118, %71 : vector<8x32xf32>
    %128 = arith.mulf %112, %120 : vector<8x32xf32>
    %129 = arith.addf %127, %128 : vector<8x32xf32>
    %130 = math.tanh %129 : vector<8x32xf32>
    %131 = arith.mulf %126, %130 : vector<8x32xf32>
    %132 = vector.extract_strided_slice %7 {offsets = [16, 0], sizes = [8, 128], strides = [1, 1]} : vector<64x128xf32> to vector<8x128xf32>
    %cst_34 = arith.constant dense<0.000000e+00> : vector<8x128xf32>
    %133 = tpu.matmul %101, %8, %cst_34 {dimension_numbers = #tpu.dot_dimension_numbers<[1], [0], [0], [1], [0, 0, 1, 1], [], []>} : vector<8x32xf32>, vector<32x128xf32>, vector<8x128xf32> -> vector<8x128xf32>
    %134 = arith.addf %132, %133 : vector<8x128xf32>
    %135 = vector.extract_strided_slice %134 {offsets = [0, 0], sizes = [8, 32], strides = [1, 1]} : vector<8x128xf32> to vector<8x32xf32>
    %136 = arith.negf %135 : vector<8x32xf32>
    %137 = math.exp %136 : vector<8x32xf32>
    %cst_35 = arith.constant 1.000000e+00 : f32
    %138 = vector.broadcast %cst_35 : f32 to vector<8x32xf32>
    %139 = arith.addf %138, %137 : vector<8x32xf32>
    %140 = arith.divf %138, %139 : vector<8x32xf32>
    %141 = vector.extract_strided_slice %134 {offsets = [0, 32], sizes = [8, 32], strides = [1, 1]} : vector<8x128xf32> to vector<8x32xf32>
    %142 = arith.negf %141 : vector<8x32xf32>
    %143 = math.exp %142 : vector<8x32xf32>
    %cst_36 = arith.constant 1.000000e+00 : f32
    %144 = vector.broadcast %cst_36 : f32 to vector<8x32xf32>
    %145 = arith.addf %144, %143 : vector<8x32xf32>
    %146 = arith.divf %144, %145 : vector<8x32xf32>
    %147 = vector.extract_strided_slice %134 {offsets = [0, 64], sizes = [8, 32], strides = [1, 1]} : vector<8x128xf32> to vector<8x32xf32>
    %148 = math.tanh %147 : vector<8x32xf32>
    %149 = vector.extract_strided_slice %134 {offsets = [0, 96], sizes = [8, 32], strides = [1, 1]} : vector<8x128xf32> to vector<8x32xf32>
    %150 = arith.negf %149 : vector<8x32xf32>
    %151 = math.exp %150 : vector<8x32xf32>
    %cst_37 = arith.constant 1.000000e+00 : f32
    %152 = vector.broadcast %cst_37 : f32 to vector<8x32xf32>
    %153 = arith.addf %152, %151 : vector<8x32xf32>
    %154 = arith.divf %152, %153 : vector<8x32xf32>
    %155 = arith.mulf %146, %99 : vector<8x32xf32>
    %156 = arith.mulf %140, %148 : vector<8x32xf32>
    %157 = arith.addf %155, %156 : vector<8x32xf32>
    %158 = math.tanh %157 : vector<8x32xf32>
    %159 = arith.mulf %154, %158 : vector<8x32xf32>
    %cst_38 = arith.constant dense<0.000000e+00> : vector<8x128xf32>
    %160 = tpu.matmul %159, %10, %cst_38 {dimension_numbers = #tpu.dot_dimension_numbers<[1], [0], [0], [1], [0, 0, 1, 1], [], []>} : vector<8x32xf32>, vector<32x128xf32>, vector<8x128xf32> -> vector<8x128xf32>
    %161 = vector.broadcast %11 : vector<1x128xf32> to vector<8x128xf32>
    %162 = arith.addf %160, %161 : vector<8x128xf32>
    %cst_39 = arith.constant dense<0.000000e+00> : vector<8x128xf32>
    %163 = tpu.matmul %131, %9, %cst_39 {dimension_numbers = #tpu.dot_dimension_numbers<[1], [0], [0], [1], [0, 0, 1, 1], [], []>} : vector<8x32xf32>, vector<32x128xf32>, vector<8x128xf32> -> vector<8x128xf32>
    %164 = arith.addf %162, %163 : vector<8x128xf32>
    %165 = vector.extract_strided_slice %164 {offsets = [0, 0], sizes = [8, 32], strides = [1, 1]} : vector<8x128xf32> to vector<8x32xf32>
    %166 = arith.negf %165 : vector<8x32xf32>
    %167 = math.exp %166 : vector<8x32xf32>
    %cst_40 = arith.constant 1.000000e+00 : f32
    %168 = vector.broadcast %cst_40 : f32 to vector<8x32xf32>
    %169 = arith.addf %168, %167 : vector<8x32xf32>
    %170 = arith.divf %168, %169 : vector<8x32xf32>
    %171 = vector.extract_strided_slice %164 {offsets = [0, 32], sizes = [8, 32], strides = [1, 1]} : vector<8x128xf32> to vector<8x32xf32>
    %172 = arith.negf %171 : vector<8x32xf32>
    %173 = math.exp %172 : vector<8x32xf32>
    %cst_41 = arith.constant 1.000000e+00 : f32
    %174 = vector.broadcast %cst_41 : f32 to vector<8x32xf32>
    %175 = arith.addf %174, %173 : vector<8x32xf32>
    %176 = arith.divf %174, %175 : vector<8x32xf32>
    %177 = vector.extract_strided_slice %164 {offsets = [0, 64], sizes = [8, 32], strides = [1, 1]} : vector<8x128xf32> to vector<8x32xf32>
    %178 = math.tanh %177 : vector<8x32xf32>
    %179 = vector.extract_strided_slice %164 {offsets = [0, 96], sizes = [8, 32], strides = [1, 1]} : vector<8x128xf32> to vector<8x32xf32>
    %180 = arith.negf %179 : vector<8x32xf32>
    %181 = math.exp %180 : vector<8x32xf32>
    %cst_42 = arith.constant 1.000000e+00 : f32
    %182 = vector.broadcast %cst_42 : f32 to vector<8x32xf32>
    %183 = arith.addf %182, %181 : vector<8x32xf32>
    %184 = arith.divf %182, %183 : vector<8x32xf32>
    %185 = arith.mulf %176, %129 : vector<8x32xf32>
    %186 = arith.mulf %170, %178 : vector<8x32xf32>
    %187 = arith.addf %185, %186 : vector<8x32xf32>
    %188 = math.tanh %187 : vector<8x32xf32>
    %189 = arith.mulf %184, %188 : vector<8x32xf32>
    %190 = vector.extract_strided_slice %7 {offsets = [24, 0], sizes = [8, 128], strides = [1, 1]} : vector<64x128xf32> to vector<8x128xf32>
    %cst_43 = arith.constant dense<0.000000e+00> : vector<8x128xf32>
    %191 = tpu.matmul %159, %8, %cst_43 {dimension_numbers = #tpu.dot_dimension_numbers<[1], [0], [0], [1], [0, 0, 1, 1], [], []>} : vector<8x32xf32>, vector<32x128xf32>, vector<8x128xf32> -> vector<8x128xf32>
    %192 = arith.addf %190, %191 : vector<8x128xf32>
    %193 = vector.extract_strided_slice %192 {offsets = [0, 0], sizes = [8, 32], strides = [1, 1]} : vector<8x128xf32> to vector<8x32xf32>
    %194 = arith.negf %193 : vector<8x32xf32>
    %195 = math.exp %194 : vector<8x32xf32>
    %cst_44 = arith.constant 1.000000e+00 : f32
    %196 = vector.broadcast %cst_44 : f32 to vector<8x32xf32>
    %197 = arith.addf %196, %195 : vector<8x32xf32>
    %198 = arith.divf %196, %197 : vector<8x32xf32>
    %199 = vector.extract_strided_slice %192 {offsets = [0, 32], sizes = [8, 32], strides = [1, 1]} : vector<8x128xf32> to vector<8x32xf32>
    %200 = arith.negf %199 : vector<8x32xf32>
    %201 = math.exp %200 : vector<8x32xf32>
    %cst_45 = arith.constant 1.000000e+00 : f32
    %202 = vector.broadcast %cst_45 : f32 to vector<8x32xf32>
    %203 = arith.addf %202, %201 : vector<8x32xf32>
    %204 = arith.divf %202, %203 : vector<8x32xf32>
    %205 = vector.extract_strided_slice %192 {offsets = [0, 64], sizes = [8, 32], strides = [1, 1]} : vector<8x128xf32> to vector<8x32xf32>
    %206 = math.tanh %205 : vector<8x32xf32>
    %207 = vector.extract_strided_slice %192 {offsets = [0, 96], sizes = [8, 32], strides = [1, 1]} : vector<8x128xf32> to vector<8x32xf32>
    %208 = arith.negf %207 : vector<8x32xf32>
    %209 = math.exp %208 : vector<8x32xf32>
    %cst_46 = arith.constant 1.000000e+00 : f32
    %210 = vector.broadcast %cst_46 : f32 to vector<8x32xf32>
    %211 = arith.addf %210, %209 : vector<8x32xf32>
    %212 = arith.divf %210, %211 : vector<8x32xf32>
    %213 = arith.mulf %204, %157 : vector<8x32xf32>
    %214 = arith.mulf %198, %206 : vector<8x32xf32>
    %215 = arith.addf %213, %214 : vector<8x32xf32>
    %216 = math.tanh %215 : vector<8x32xf32>
    %217 = arith.mulf %212, %216 : vector<8x32xf32>
    %cst_47 = arith.constant dense<0.000000e+00> : vector<8x128xf32>
    %218 = tpu.matmul %217, %10, %cst_47 {dimension_numbers = #tpu.dot_dimension_numbers<[1], [0], [0], [1], [0, 0, 1, 1], [], []>} : vector<8x32xf32>, vector<32x128xf32>, vector<8x128xf32> -> vector<8x128xf32>
    %219 = vector.broadcast %11 : vector<1x128xf32> to vector<8x128xf32>
    %220 = arith.addf %218, %219 : vector<8x128xf32>
    %cst_48 = arith.constant dense<0.000000e+00> : vector<8x128xf32>
    %221 = tpu.matmul %189, %9, %cst_48 {dimension_numbers = #tpu.dot_dimension_numbers<[1], [0], [0], [1], [0, 0, 1, 1], [], []>} : vector<8x32xf32>, vector<32x128xf32>, vector<8x128xf32> -> vector<8x128xf32>
    %222 = arith.addf %220, %221 : vector<8x128xf32>
    %223 = vector.extract_strided_slice %222 {offsets = [0, 0], sizes = [8, 32], strides = [1, 1]} : vector<8x128xf32> to vector<8x32xf32>
    %224 = arith.negf %223 : vector<8x32xf32>
    %225 = math.exp %224 : vector<8x32xf32>
    %cst_49 = arith.constant 1.000000e+00 : f32
    %226 = vector.broadcast %cst_49 : f32 to vector<8x32xf32>
    %227 = arith.addf %226, %225 : vector<8x32xf32>
    %228 = arith.divf %226, %227 : vector<8x32xf32>
    %229 = vector.extract_strided_slice %222 {offsets = [0, 32], sizes = [8, 32], strides = [1, 1]} : vector<8x128xf32> to vector<8x32xf32>
    %230 = arith.negf %229 : vector<8x32xf32>
    %231 = math.exp %230 : vector<8x32xf32>
    %cst_50 = arith.constant 1.000000e+00 : f32
    %232 = vector.broadcast %cst_50 : f32 to vector<8x32xf32>
    %233 = arith.addf %232, %231 : vector<8x32xf32>
    %234 = arith.divf %232, %233 : vector<8x32xf32>
    %235 = vector.extract_strided_slice %222 {offsets = [0, 64], sizes = [8, 32], strides = [1, 1]} : vector<8x128xf32> to vector<8x32xf32>
    %236 = math.tanh %235 : vector<8x32xf32>
    %237 = vector.extract_strided_slice %222 {offsets = [0, 96], sizes = [8, 32], strides = [1, 1]} : vector<8x128xf32> to vector<8x32xf32>
    %238 = arith.negf %237 : vector<8x32xf32>
    %239 = math.exp %238 : vector<8x32xf32>
    %cst_51 = arith.constant 1.000000e+00 : f32
    %240 = vector.broadcast %cst_51 : f32 to vector<8x32xf32>
    %241 = arith.addf %240, %239 : vector<8x32xf32>
    %242 = arith.divf %240, %241 : vector<8x32xf32>
    %243 = arith.mulf %234, %187 : vector<8x32xf32>
    %244 = arith.mulf %228, %236 : vector<8x32xf32>
    %245 = arith.addf %243, %244 : vector<8x32xf32>
    %246 = math.tanh %245 : vector<8x32xf32>
    %247 = arith.mulf %242, %246 : vector<8x32xf32>
    %248 = vector.extract_strided_slice %7 {offsets = [32, 0], sizes = [8, 128], strides = [1, 1]} : vector<64x128xf32> to vector<8x128xf32>
    %cst_52 = arith.constant dense<0.000000e+00> : vector<8x128xf32>
    %249 = tpu.matmul %217, %8, %cst_52 {dimension_numbers = #tpu.dot_dimension_numbers<[1], [0], [0], [1], [0, 0, 1, 1], [], []>} : vector<8x32xf32>, vector<32x128xf32>, vector<8x128xf32> -> vector<8x128xf32>
    %250 = arith.addf %248, %249 : vector<8x128xf32>
    %251 = vector.extract_strided_slice %250 {offsets = [0, 0], sizes = [8, 32], strides = [1, 1]} : vector<8x128xf32> to vector<8x32xf32>
    %252 = arith.negf %251 : vector<8x32xf32>
    %253 = math.exp %252 : vector<8x32xf32>
    %cst_53 = arith.constant 1.000000e+00 : f32
    %254 = vector.broadcast %cst_53 : f32 to vector<8x32xf32>
    %255 = arith.addf %254, %253 : vector<8x32xf32>
    %256 = arith.divf %254, %255 : vector<8x32xf32>
    %257 = vector.extract_strided_slice %250 {offsets = [0, 32], sizes = [8, 32], strides = [1, 1]} : vector<8x128xf32> to vector<8x32xf32>
    %258 = arith.negf %257 : vector<8x32xf32>
    %259 = math.exp %258 : vector<8x32xf32>
    %cst_54 = arith.constant 1.000000e+00 : f32
    %260 = vector.broadcast %cst_54 : f32 to vector<8x32xf32>
    %261 = arith.addf %260, %259 : vector<8x32xf32>
    %262 = arith.divf %260, %261 : vector<8x32xf32>
    %263 = vector.extract_strided_slice %250 {offsets = [0, 64], sizes = [8, 32], strides = [1, 1]} : vector<8x128xf32> to vector<8x32xf32>
    %264 = math.tanh %263 : vector<8x32xf32>
    %265 = vector.extract_strided_slice %250 {offsets = [0, 96], sizes = [8, 32], strides = [1, 1]} : vector<8x128xf32> to vector<8x32xf32>
    %266 = arith.negf %265 : vector<8x32xf32>
    %267 = math.exp %266 : vector<8x32xf32>
    %cst_55 = arith.constant 1.000000e+00 : f32
    %268 = vector.broadcast %cst_55 : f32 to vector<8x32xf32>
    %269 = arith.addf %268, %267 : vector<8x32xf32>
    %270 = arith.divf %268, %269 : vector<8x32xf32>
    %271 = arith.mulf %262, %215 : vector<8x32xf32>
    %272 = arith.mulf %256, %264 : vector<8x32xf32>
    %273 = arith.addf %271, %272 : vector<8x32xf32>
    %274 = math.tanh %273 : vector<8x32xf32>
    %275 = arith.mulf %270, %274 : vector<8x32xf32>
    %cst_56 = arith.constant dense<0.000000e+00> : vector<8x128xf32>
    %276 = tpu.matmul %275, %10, %cst_56 {dimension_numbers = #tpu.dot_dimension_numbers<[1], [0], [0], [1], [0, 0, 1, 1], [], []>} : vector<8x32xf32>, vector<32x128xf32>, vector<8x128xf32> -> vector<8x128xf32>
    %277 = vector.broadcast %11 : vector<1x128xf32> to vector<8x128xf32>
    %278 = arith.addf %276, %277 : vector<8x128xf32>
    %cst_57 = arith.constant dense<0.000000e+00> : vector<8x128xf32>
    %279 = tpu.matmul %247, %9, %cst_57 {dimension_numbers = #tpu.dot_dimension_numbers<[1], [0], [0], [1], [0, 0, 1, 1], [], []>} : vector<8x32xf32>, vector<32x128xf32>, vector<8x128xf32> -> vector<8x128xf32>
    %280 = arith.addf %278, %279 : vector<8x128xf32>
    %281 = vector.extract_strided_slice %280 {offsets = [0, 0], sizes = [8, 32], strides = [1, 1]} : vector<8x128xf32> to vector<8x32xf32>
    %282 = arith.negf %281 : vector<8x32xf32>
    %283 = math.exp %282 : vector<8x32xf32>
    %cst_58 = arith.constant 1.000000e+00 : f32
    %284 = vector.broadcast %cst_58 : f32 to vector<8x32xf32>
    %285 = arith.addf %284, %283 : vector<8x32xf32>
    %286 = arith.divf %284, %285 : vector<8x32xf32>
    %287 = vector.extract_strided_slice %280 {offsets = [0, 32], sizes = [8, 32], strides = [1, 1]} : vector<8x128xf32> to vector<8x32xf32>
    %288 = arith.negf %287 : vector<8x32xf32>
    %289 = math.exp %288 : vector<8x32xf32>
    %cst_59 = arith.constant 1.000000e+00 : f32
    %290 = vector.broadcast %cst_59 : f32 to vector<8x32xf32>
    %291 = arith.addf %290, %289 : vector<8x32xf32>
    %292 = arith.divf %290, %291 : vector<8x32xf32>
    %293 = vector.extract_strided_slice %280 {offsets = [0, 64], sizes = [8, 32], strides = [1, 1]} : vector<8x128xf32> to vector<8x32xf32>
    %294 = math.tanh %293 : vector<8x32xf32>
    %295 = vector.extract_strided_slice %280 {offsets = [0, 96], sizes = [8, 32], strides = [1, 1]} : vector<8x128xf32> to vector<8x32xf32>
    %296 = arith.negf %295 : vector<8x32xf32>
    %297 = math.exp %296 : vector<8x32xf32>
    %cst_60 = arith.constant 1.000000e+00 : f32
    %298 = vector.broadcast %cst_60 : f32 to vector<8x32xf32>
    %299 = arith.addf %298, %297 : vector<8x32xf32>
    %300 = arith.divf %298, %299 : vector<8x32xf32>
    %301 = arith.mulf %292, %245 : vector<8x32xf32>
    %302 = arith.mulf %286, %294 : vector<8x32xf32>
    %303 = arith.addf %301, %302 : vector<8x32xf32>
    %304 = math.tanh %303 : vector<8x32xf32>
    %305 = arith.mulf %300, %304 : vector<8x32xf32>
    %306 = vector.extract_strided_slice %7 {offsets = [40, 0], sizes = [8, 128], strides = [1, 1]} : vector<64x128xf32> to vector<8x128xf32>
    %cst_61 = arith.constant dense<0.000000e+00> : vector<8x128xf32>
    %307 = tpu.matmul %275, %8, %cst_61 {dimension_numbers = #tpu.dot_dimension_numbers<[1], [0], [0], [1], [0, 0, 1, 1], [], []>} : vector<8x32xf32>, vector<32x128xf32>, vector<8x128xf32> -> vector<8x128xf32>
    %308 = arith.addf %306, %307 : vector<8x128xf32>
    %309 = vector.extract_strided_slice %308 {offsets = [0, 0], sizes = [8, 32], strides = [1, 1]} : vector<8x128xf32> to vector<8x32xf32>
    %310 = arith.negf %309 : vector<8x32xf32>
    %311 = math.exp %310 : vector<8x32xf32>
    %cst_62 = arith.constant 1.000000e+00 : f32
    %312 = vector.broadcast %cst_62 : f32 to vector<8x32xf32>
    %313 = arith.addf %312, %311 : vector<8x32xf32>
    %314 = arith.divf %312, %313 : vector<8x32xf32>
    %315 = vector.extract_strided_slice %308 {offsets = [0, 32], sizes = [8, 32], strides = [1, 1]} : vector<8x128xf32> to vector<8x32xf32>
    %316 = arith.negf %315 : vector<8x32xf32>
    %317 = math.exp %316 : vector<8x32xf32>
    %cst_63 = arith.constant 1.000000e+00 : f32
    %318 = vector.broadcast %cst_63 : f32 to vector<8x32xf32>
    %319 = arith.addf %318, %317 : vector<8x32xf32>
    %320 = arith.divf %318, %319 : vector<8x32xf32>
    %321 = vector.extract_strided_slice %308 {offsets = [0, 64], sizes = [8, 32], strides = [1, 1]} : vector<8x128xf32> to vector<8x32xf32>
    %322 = math.tanh %321 : vector<8x32xf32>
    %323 = vector.extract_strided_slice %308 {offsets = [0, 96], sizes = [8, 32], strides = [1, 1]} : vector<8x128xf32> to vector<8x32xf32>
    %324 = arith.negf %323 : vector<8x32xf32>
    %325 = math.exp %324 : vector<8x32xf32>
    %cst_64 = arith.constant 1.000000e+00 : f32
    %326 = vector.broadcast %cst_64 : f32 to vector<8x32xf32>
    %327 = arith.addf %326, %325 : vector<8x32xf32>
    %328 = arith.divf %326, %327 : vector<8x32xf32>
    %329 = arith.mulf %320, %273 : vector<8x32xf32>
    %330 = arith.mulf %314, %322 : vector<8x32xf32>
    %331 = arith.addf %329, %330 : vector<8x32xf32>
    %332 = math.tanh %331 : vector<8x32xf32>
    %333 = arith.mulf %328, %332 : vector<8x32xf32>
    %cst_65 = arith.constant dense<0.000000e+00> : vector<8x128xf32>
    %334 = tpu.matmul %333, %10, %cst_65 {dimension_numbers = #tpu.dot_dimension_numbers<[1], [0], [0], [1], [0, 0, 1, 1], [], []>} : vector<8x32xf32>, vector<32x128xf32>, vector<8x128xf32> -> vector<8x128xf32>
    %335 = vector.broadcast %11 : vector<1x128xf32> to vector<8x128xf32>
    %336 = arith.addf %334, %335 : vector<8x128xf32>
    %cst_66 = arith.constant dense<0.000000e+00> : vector<8x128xf32>
    %337 = tpu.matmul %305, %9, %cst_66 {dimension_numbers = #tpu.dot_dimension_numbers<[1], [0], [0], [1], [0, 0, 1, 1], [], []>} : vector<8x32xf32>, vector<32x128xf32>, vector<8x128xf32> -> vector<8x128xf32>
    %338 = arith.addf %336, %337 : vector<8x128xf32>
    %339 = vector.extract_strided_slice %338 {offsets = [0, 0], sizes = [8, 32], strides = [1, 1]} : vector<8x128xf32> to vector<8x32xf32>
    %340 = arith.negf %339 : vector<8x32xf32>
    %341 = math.exp %340 : vector<8x32xf32>
    %cst_67 = arith.constant 1.000000e+00 : f32
    %342 = vector.broadcast %cst_67 : f32 to vector<8x32xf32>
    %343 = arith.addf %342, %341 : vector<8x32xf32>
    %344 = arith.divf %342, %343 : vector<8x32xf32>
    %345 = vector.extract_strided_slice %338 {offsets = [0, 32], sizes = [8, 32], strides = [1, 1]} : vector<8x128xf32> to vector<8x32xf32>
    %346 = arith.negf %345 : vector<8x32xf32>
    %347 = math.exp %346 : vector<8x32xf32>
    %cst_68 = arith.constant 1.000000e+00 : f32
    %348 = vector.broadcast %cst_68 : f32 to vector<8x32xf32>
    %349 = arith.addf %348, %347 : vector<8x32xf32>
    %350 = arith.divf %348, %349 : vector<8x32xf32>
    %351 = vector.extract_strided_slice %338 {offsets = [0, 64], sizes = [8, 32], strides = [1, 1]} : vector<8x128xf32> to vector<8x32xf32>
    %352 = math.tanh %351 : vector<8x32xf32>
    %353 = vector.extract_strided_slice %338 {offsets = [0, 96], sizes = [8, 32], strides = [1, 1]} : vector<8x128xf32> to vector<8x32xf32>
    %354 = arith.negf %353 : vector<8x32xf32>
    %355 = math.exp %354 : vector<8x32xf32>
    %cst_69 = arith.constant 1.000000e+00 : f32
    %356 = vector.broadcast %cst_69 : f32 to vector<8x32xf32>
    %357 = arith.addf %356, %355 : vector<8x32xf32>
    %358 = arith.divf %356, %357 : vector<8x32xf32>
    %359 = arith.mulf %350, %303 : vector<8x32xf32>
    %360 = arith.mulf %344, %352 : vector<8x32xf32>
    %361 = arith.addf %359, %360 : vector<8x32xf32>
    %362 = math.tanh %361 : vector<8x32xf32>
    %363 = arith.mulf %358, %362 : vector<8x32xf32>
    %364 = vector.extract_strided_slice %7 {offsets = [48, 0], sizes = [8, 128], strides = [1, 1]} : vector<64x128xf32> to vector<8x128xf32>
    %cst_70 = arith.constant dense<0.000000e+00> : vector<8x128xf32>
    %365 = tpu.matmul %333, %8, %cst_70 {dimension_numbers = #tpu.dot_dimension_numbers<[1], [0], [0], [1], [0, 0, 1, 1], [], []>} : vector<8x32xf32>, vector<32x128xf32>, vector<8x128xf32> -> vector<8x128xf32>
    %366 = arith.addf %364, %365 : vector<8x128xf32>
    %367 = vector.extract_strided_slice %366 {offsets = [0, 0], sizes = [8, 32], strides = [1, 1]} : vector<8x128xf32> to vector<8x32xf32>
    %368 = arith.negf %367 : vector<8x32xf32>
    %369 = math.exp %368 : vector<8x32xf32>
    %cst_71 = arith.constant 1.000000e+00 : f32
    %370 = vector.broadcast %cst_71 : f32 to vector<8x32xf32>
    %371 = arith.addf %370, %369 : vector<8x32xf32>
    %372 = arith.divf %370, %371 : vector<8x32xf32>
    %373 = vector.extract_strided_slice %366 {offsets = [0, 32], sizes = [8, 32], strides = [1, 1]} : vector<8x128xf32> to vector<8x32xf32>
    %374 = arith.negf %373 : vector<8x32xf32>
    %375 = math.exp %374 : vector<8x32xf32>
    %cst_72 = arith.constant 1.000000e+00 : f32
    %376 = vector.broadcast %cst_72 : f32 to vector<8x32xf32>
    %377 = arith.addf %376, %375 : vector<8x32xf32>
    %378 = arith.divf %376, %377 : vector<8x32xf32>
    %379 = vector.extract_strided_slice %366 {offsets = [0, 64], sizes = [8, 32], strides = [1, 1]} : vector<8x128xf32> to vector<8x32xf32>
    %380 = math.tanh %379 : vector<8x32xf32>
    %381 = vector.extract_strided_slice %366 {offsets = [0, 96], sizes = [8, 32], strides = [1, 1]} : vector<8x128xf32> to vector<8x32xf32>
    %382 = arith.negf %381 : vector<8x32xf32>
    %383 = math.exp %382 : vector<8x32xf32>
    %cst_73 = arith.constant 1.000000e+00 : f32
    %384 = vector.broadcast %cst_73 : f32 to vector<8x32xf32>
    %385 = arith.addf %384, %383 : vector<8x32xf32>
    %386 = arith.divf %384, %385 : vector<8x32xf32>
    %387 = arith.mulf %378, %331 : vector<8x32xf32>
    %388 = arith.mulf %372, %380 : vector<8x32xf32>
    %389 = arith.addf %387, %388 : vector<8x32xf32>
    %390 = math.tanh %389 : vector<8x32xf32>
    %391 = arith.mulf %386, %390 : vector<8x32xf32>
    %cst_74 = arith.constant dense<0.000000e+00> : vector<8x128xf32>
    %392 = tpu.matmul %391, %10, %cst_74 {dimension_numbers = #tpu.dot_dimension_numbers<[1], [0], [0], [1], [0, 0, 1, 1], [], []>} : vector<8x32xf32>, vector<32x128xf32>, vector<8x128xf32> -> vector<8x128xf32>
    %393 = vector.broadcast %11 : vector<1x128xf32> to vector<8x128xf32>
    %394 = arith.addf %392, %393 : vector<8x128xf32>
    %cst_75 = arith.constant dense<0.000000e+00> : vector<8x128xf32>
    %395 = tpu.matmul %363, %9, %cst_75 {dimension_numbers = #tpu.dot_dimension_numbers<[1], [0], [0], [1], [0, 0, 1, 1], [], []>} : vector<8x32xf32>, vector<32x128xf32>, vector<8x128xf32> -> vector<8x128xf32>
    %396 = arith.addf %394, %395 : vector<8x128xf32>
    %397 = vector.extract_strided_slice %396 {offsets = [0, 0], sizes = [8, 32], strides = [1, 1]} : vector<8x128xf32> to vector<8x32xf32>
    %398 = arith.negf %397 : vector<8x32xf32>
    %399 = math.exp %398 : vector<8x32xf32>
    %cst_76 = arith.constant 1.000000e+00 : f32
    %400 = vector.broadcast %cst_76 : f32 to vector<8x32xf32>
    %401 = arith.addf %400, %399 : vector<8x32xf32>
    %402 = arith.divf %400, %401 : vector<8x32xf32>
    %403 = vector.extract_strided_slice %396 {offsets = [0, 32], sizes = [8, 32], strides = [1, 1]} : vector<8x128xf32> to vector<8x32xf32>
    %404 = arith.negf %403 : vector<8x32xf32>
    %405 = math.exp %404 : vector<8x32xf32>
    %cst_77 = arith.constant 1.000000e+00 : f32
    %406 = vector.broadcast %cst_77 : f32 to vector<8x32xf32>
    %407 = arith.addf %406, %405 : vector<8x32xf32>
    %408 = arith.divf %406, %407 : vector<8x32xf32>
    %409 = vector.extract_strided_slice %396 {offsets = [0, 64], sizes = [8, 32], strides = [1, 1]} : vector<8x128xf32> to vector<8x32xf32>
    %410 = math.tanh %409 : vector<8x32xf32>
    %411 = vector.extract_strided_slice %396 {offsets = [0, 96], sizes = [8, 32], strides = [1, 1]} : vector<8x128xf32> to vector<8x32xf32>
    %412 = arith.negf %411 : vector<8x32xf32>
    %413 = math.exp %412 : vector<8x32xf32>
    %cst_78 = arith.constant 1.000000e+00 : f32
    %414 = vector.broadcast %cst_78 : f32 to vector<8x32xf32>
    %415 = arith.addf %414, %413 : vector<8x32xf32>
    %416 = arith.divf %414, %415 : vector<8x32xf32>
    %417 = arith.mulf %408, %361 : vector<8x32xf32>
    %418 = arith.mulf %402, %410 : vector<8x32xf32>
    %419 = arith.addf %417, %418 : vector<8x32xf32>
    %420 = math.tanh %419 : vector<8x32xf32>
    %421 = arith.mulf %416, %420 : vector<8x32xf32>
    %422 = vector.extract_strided_slice %7 {offsets = [56, 0], sizes = [8, 128], strides = [1, 1]} : vector<64x128xf32> to vector<8x128xf32>
    %cst_79 = arith.constant dense<0.000000e+00> : vector<8x128xf32>
    %423 = tpu.matmul %391, %8, %cst_79 {dimension_numbers = #tpu.dot_dimension_numbers<[1], [0], [0], [1], [0, 0, 1, 1], [], []>} : vector<8x32xf32>, vector<32x128xf32>, vector<8x128xf32> -> vector<8x128xf32>
    %424 = arith.addf %422, %423 : vector<8x128xf32>
    %425 = vector.extract_strided_slice %424 {offsets = [0, 0], sizes = [8, 32], strides = [1, 1]} : vector<8x128xf32> to vector<8x32xf32>
    %426 = arith.negf %425 : vector<8x32xf32>
    %427 = math.exp %426 : vector<8x32xf32>
    %cst_80 = arith.constant 1.000000e+00 : f32
    %428 = vector.broadcast %cst_80 : f32 to vector<8x32xf32>
    %429 = arith.addf %428, %427 : vector<8x32xf32>
    %430 = arith.divf %428, %429 : vector<8x32xf32>
    %431 = vector.extract_strided_slice %424 {offsets = [0, 32], sizes = [8, 32], strides = [1, 1]} : vector<8x128xf32> to vector<8x32xf32>
    %432 = arith.negf %431 : vector<8x32xf32>
    %433 = math.exp %432 : vector<8x32xf32>
    %cst_81 = arith.constant 1.000000e+00 : f32
    %434 = vector.broadcast %cst_81 : f32 to vector<8x32xf32>
    %435 = arith.addf %434, %433 : vector<8x32xf32>
    %436 = arith.divf %434, %435 : vector<8x32xf32>
    %437 = vector.extract_strided_slice %424 {offsets = [0, 64], sizes = [8, 32], strides = [1, 1]} : vector<8x128xf32> to vector<8x32xf32>
    %438 = math.tanh %437 : vector<8x32xf32>
    %439 = vector.extract_strided_slice %424 {offsets = [0, 96], sizes = [8, 32], strides = [1, 1]} : vector<8x128xf32> to vector<8x32xf32>
    %440 = arith.negf %439 : vector<8x32xf32>
    %441 = math.exp %440 : vector<8x32xf32>
    %cst_82 = arith.constant 1.000000e+00 : f32
    %442 = vector.broadcast %cst_82 : f32 to vector<8x32xf32>
    %443 = arith.addf %442, %441 : vector<8x32xf32>
    %444 = arith.divf %442, %443 : vector<8x32xf32>
    %445 = arith.mulf %436, %389 : vector<8x32xf32>
    %446 = arith.mulf %430, %438 : vector<8x32xf32>
    %447 = arith.addf %445, %446 : vector<8x32xf32>
    %448 = math.tanh %447 : vector<8x32xf32>
    %449 = arith.mulf %444, %448 : vector<8x32xf32>
    %cst_83 = arith.constant dense<0.000000e+00> : vector<8x128xf32>
    %450 = tpu.matmul %449, %10, %cst_83 {dimension_numbers = #tpu.dot_dimension_numbers<[1], [0], [0], [1], [0, 0, 1, 1], [], []>} : vector<8x32xf32>, vector<32x128xf32>, vector<8x128xf32> -> vector<8x128xf32>
    %451 = vector.broadcast %11 : vector<1x128xf32> to vector<8x128xf32>
    %452 = arith.addf %450, %451 : vector<8x128xf32>
    %cst_84 = arith.constant dense<0.000000e+00> : vector<8x128xf32>
    %453 = tpu.matmul %421, %9, %cst_84 {dimension_numbers = #tpu.dot_dimension_numbers<[1], [0], [0], [1], [0, 0, 1, 1], [], []>} : vector<8x32xf32>, vector<32x128xf32>, vector<8x128xf32> -> vector<8x128xf32>
    %454 = arith.addf %452, %453 : vector<8x128xf32>
    %455 = vector.extract_strided_slice %454 {offsets = [0, 0], sizes = [8, 32], strides = [1, 1]} : vector<8x128xf32> to vector<8x32xf32>
    %456 = arith.negf %455 : vector<8x32xf32>
    %457 = math.exp %456 : vector<8x32xf32>
    %cst_85 = arith.constant 1.000000e+00 : f32
    %458 = vector.broadcast %cst_85 : f32 to vector<8x32xf32>
    %459 = arith.addf %458, %457 : vector<8x32xf32>
    %460 = arith.divf %458, %459 : vector<8x32xf32>
    %461 = vector.extract_strided_slice %454 {offsets = [0, 32], sizes = [8, 32], strides = [1, 1]} : vector<8x128xf32> to vector<8x32xf32>
    %462 = arith.negf %461 : vector<8x32xf32>
    %463 = math.exp %462 : vector<8x32xf32>
    %cst_86 = arith.constant 1.000000e+00 : f32
    %464 = vector.broadcast %cst_86 : f32 to vector<8x32xf32>
    %465 = arith.addf %464, %463 : vector<8x32xf32>
    %466 = arith.divf %464, %465 : vector<8x32xf32>
    %467 = vector.extract_strided_slice %454 {offsets = [0, 64], sizes = [8, 32], strides = [1, 1]} : vector<8x128xf32> to vector<8x32xf32>
    %468 = math.tanh %467 : vector<8x32xf32>
    %469 = vector.extract_strided_slice %454 {offsets = [0, 96], sizes = [8, 32], strides = [1, 1]} : vector<8x128xf32> to vector<8x32xf32>
    %470 = arith.negf %469 : vector<8x32xf32>
    %471 = math.exp %470 : vector<8x32xf32>
    %cst_87 = arith.constant 1.000000e+00 : f32
    %472 = vector.broadcast %cst_87 : f32 to vector<8x32xf32>
    %473 = arith.addf %472, %471 : vector<8x32xf32>
    %474 = arith.divf %472, %473 : vector<8x32xf32>
    %475 = arith.mulf %466, %419 : vector<8x32xf32>
    %476 = arith.mulf %460, %468 : vector<8x32xf32>
    %477 = arith.addf %475, %476 : vector<8x32xf32>
    %478 = math.tanh %477 : vector<8x32xf32>
    %479 = arith.mulf %474, %478 : vector<8x32xf32>
    %c0_88 = arith.constant 0 : index
    %c0_89 = arith.constant 0 : index
    %480 = vector.load %arg7[%c0_88, %c0_89] : memref<32x128xf32, #tpu.memory_space<vmem>>, vector<32x128xf32>
    %cst_90 = arith.constant dense<0.000000e+00> : vector<8x128xf32>
    %481 = tpu.matmul %479, %480, %cst_90 {dimension_numbers = #tpu.dot_dimension_numbers<[1], [0], [0], [1], [0, 0, 1, 1], [], []>} : vector<8x32xf32>, vector<32x128xf32>, vector<8x128xf32> -> vector<8x128xf32>
    %c0_91 = arith.constant 0 : index
    %c0_92 = arith.constant 0 : index
    %482 = vector.load %arg8[%c0_91, %c0_92] : memref<1x128xf32, #tpu.memory_space<vmem>>, vector<1x128xf32>
    %483 = vector.broadcast %482 : vector<1x128xf32> to vector<8x128xf32>
    %484 = arith.addf %481, %483 : vector<8x128xf32>
    %c0_93 = arith.constant 0 : index
    %c0_94 = arith.constant 0 : index
    %485 = vector.load %arg9[%c0_93, %c0_94] : memref<8x128xf32, #tpu.memory_space<vmem>>, vector<8x128xf32>
    tpu.vector_store %arg9[%c0_93, %c0_94], %484 {strides = array<i32>} : memref<8x128xf32, #tpu.memory_space<vmem>>, vector<8x128xf32>,
    return
  }
}

</mosaic_0001>

<llo_original>
// kernel: _forward_impl.1
$region0: #{_forward_impl.1}
  #allocation0 [shape = 'u32[]', space=smem, size = 0x4, offset = 0x4, fixed_abs, tag = 'smem constant byte address 0x4 - core index']
  #allocation1 [shape = 'u32[144,128]{1,0:T(1,128)}', space=vmem, size = 0x12000, scoped, tag = 'internal scratch']
  %s0 = inlined_call_operand.vmem [shape: f32[64,1], index: 0, kind: input, shape index: {}]
  %s1 = inlined_call_operand.vmem [shape: f32[1,128], index: 1, kind: input, shape index: {}]
  %s2 = inlined_call_operand.vmem [shape: f32[32,128], index: 2, kind: input, shape index: {}]
  %s3 = inlined_call_operand.vmem [shape: f32[1,128], index: 3, kind: input, shape index: {}]
  %s4 = inlined_call_operand.vmem [shape: f32[32,128], index: 4, kind: input, shape index: {}]
  %s5 = inlined_call_operand.vmem [shape: f32[32,128], index: 5, kind: input, shape index: {}]
  %s6 = inlined_call_operand.vmem [shape: f32[1,128], index: 6, kind: input, shape index: {}]
  %s7 = inlined_call_operand.hbm [shape: f32[32,128], index: 7, kind: input, shape index: {}]
  %s8 = inlined_call_operand.vmem [shape: f32[1,128], index: 8, kind: input, shape index: {}]
  %s9 = inlined_call_operand.vmem [shape: f32[8,128], index: 9, kind: output, shape index: {}]
  %s10 = sld [smem:[#allocation0]]
  $region50: #{_forward_impl.1} parent=0
    _
  %s12 = ssub.s32 1, %s10
  %s13 = scalar_select 0, %s12, %s10
  $region1: #{_forward_impl.1} parent=0
    #allocation2 [shape = 'u8[16384]{0}', space=vmem, size = 0x4000, scoped, tag = 'input window, operand 7, single buffered']
    #allocation3 [shape = 's32[1]{0}', space=sflag, size = 0x4, scoped, tag = 'scoped memory for _forward_impl.1']
    %14 = vsyncpa [#allocation3], 0
    // Predicated region
    $region2: #{_forward_impl.1} parent=1 // pred_check
      _
    $region3: #{_forward_impl.1} parent=1 // pred_check_branch
      %16 = sbr.rel (0) target = $region5
    $region4: #{_forward_impl.1} parent=1 // pred_region
      _
    $region5: #{_forward_impl.1} parent=1 // pred_fallthru
      _
    // Predicated region
    $region6: #{_forward_impl.1} parent=1 // pred_check
      _
    $region7: #{_forward_impl.1} parent=1 // pred_check_branch
      %18 = sbr.rel (0) target = $region9
    $region8: #{_forward_impl.1} parent=1 // pred_region
      _
    $region9: #{_forward_impl.1} parent=1 // pred_fallthru
      _
    // Predicated region
    $region10: #{_forward_impl.1} parent=1 // pred_check
      _
    $region11: #{_forward_impl.1} parent=1 // pred_check_branch
      %20 = sbr.rel (0) target = $region13
    $region12: #{_forward_impl.1} parent=1 // pred_region
      _
    $region13: #{_forward_impl.1} parent=1 // pred_fallthru
      _
    // Predicated region
    $region14: #{_forward_impl.1} parent=1 // pred_check
      _
    $region15: #{_forward_impl.1} parent=1 // pred_check_branch
      %22 = sbr.rel (0) target = $region17
    $region16: #{_forward_impl.1} parent=1 // pred_region
      _
    $region17: #{_forward_impl.1} parent=1 // pred_fallthru
      _
    // Predicated region
    $region18: #{_forward_impl.1} parent=1 // pred_check
      _
    $region19: #{_forward_impl.1} parent=1 // pred_check_branch
      %24 = sbr.rel (0) target = $region21
    $region20: #{_forward_impl.1} parent=1 // pred_region
      _
    $region21: #{_forward_impl.1} parent=1 // pred_fallthru
      _
    // Predicated region
    $region22: #{_forward_impl.1} parent=1 // pred_check
      _
    $region23: #{_forward_impl.1} parent=1 // pred_check_branch
      %26 = sbr.rel (0) target = $region25
    $region24: #{_forward_impl.1} parent=1 // pred_region
      _
    $region25: #{_forward_impl.1} parent=1 // pred_fallthru
      _
    // Predicated region
    $region26: #{_forward_impl.1} parent=1 // pred_check
      _
    $region27: #{_forward_impl.1} parent=1 // pred_check_branch
      %28 = sbr.rel (0) target = $region29
    $region28: #{_forward_impl.1} parent=1 // pred_region
      _
    $region29: #{_forward_impl.1} parent=1 // pred_fallthru
      _
    // Predicated region
    $region30: #{_forward_impl.1} parent=1 // pred_check
      _
    $region31: #{_forward_impl.1} parent=1 // pred_check_branch
      %30 = sbr.rel (0) target = $region33
    $region32: #{_forward_impl.1} parent=1 // pred_region
      %s32 = ssub.s32 512, 512
      %33 = vsyncadd [#allocation3], %s32
      %s34 = sshll.u32 [#allocation2], 4
      %s35 = int_to_ptr.vmem [resolvable:$true] %s34
      %40 = dma.hbm_to_vmem [thread:$0]  %s7, 512, %s35, [#allocation3], 128, 128, 8
    $region33: #{_forward_impl.1} parent=1 // pred_fallthru
      _
    // Predicated region
    $region34: #{_forward_impl.1} parent=1 // pred_check
      _
    $region35: #{_forward_impl.1} parent=1 // pred_check_branch
      %42 = sbr.rel (0) target = $region37
    $region36: #{_forward_impl.1} parent=1 // pred_region
      _
    $region37: #{_forward_impl.1} parent=1 // pred_fallthru
      _
    // Predicated region
    $region38: #{_forward_impl.1} parent=1 // pred_check
      _
    $region39: #{_forward_impl.1} parent=1 // pred_check_branch
      %44 = sbr.rel (0) target = $region41
    $region40: #{_forward_impl.1} parent=1 // pred_region
      %45 = dma.done [#allocation3], 512
    $region41: #{_forward_impl.1} parent=1 // pred_fallthru
      _
    %v46 = vld [vmem:[%s1] sm:$0x1]
    %v47 = vld [vmem:[%s3] sm:$0x1]
    %v48 = vld [vmem:[%s0] sm:$0xff]
    %v49 = vld [vmem:[%s0 + $0x8] sm:$0xff]
    %v50 = vld [vmem:[%s0 + $0x10] sm:$0xff]
    %v51 = vld [vmem:[%s0 + $0x18] sm:$0xff]
    %v52 = vld [vmem:[%s0 + $0x20] sm:$0xff]
    %v53 = vld [vmem:[%s0 + $0x28] sm:$0xff]
    %v54 = vld [vmem:[%s0 + $0x30] sm:$0xff]
    %v55 = vld [vmem:[%s0 + $0x38] sm:$0xff]
    %57 = vset.pattern.permute.xlu0 0
    %58 = vperm.xlu0 %57, %v48
    %v59 = vpop.permute.xlu0 %58
    %62 = vset.pattern.permute.xlu0 0
    %63 = vperm.xlu0 %62, %v49
    %v64 = vpop.permute.xlu0 %63
    %67 = vset.pattern.permute.xlu0 0
    %68 = vperm.xlu0 %67, %v50
    %v69 = vpop.permute.xlu0 %68
    %72 = vset.pattern.permute.xlu0 0
    %73 = vperm.xlu0 %72, %v51
    %v74 = vpop.permute.xlu0 %73
    %77 = vset.pattern.permute.xlu0 0
    %78 = vperm.xlu0 %77, %v52
    %v79 = vpop.permute.xlu0 %78
    %82 = vset.pattern.permute.xlu0 0
    %83 = vperm.xlu0 %82, %v53
    %v84 = vpop.permute.xlu0 %83
    %87 = vset.pattern.permute.xlu0 0
    %88 = vperm.xlu0 %87, %v54
    %v89 = vpop.permute.xlu0 %88
    %92 = vset.pattern.permute.xlu0 0
    %93 = vperm.xlu0 %92, %v55
    %v94 = vpop.permute.xlu0 %93
    %v97 = vlaneseq
    %v98 = vshrl.u32 %v97, 7
    %v99 = vsub.s32 0, %v98
    %v100 = vrot.slane %v46, %v99
    %v102 = vmul.f32 %v59, %v100
    %v103 = vmul.f32 %v64, %v100
    %v104 = vmul.f32 %v69, %v100
    %v105 = vmul.f32 %v74, %v100
    %v106 = vmul.f32 %v79, %v100
    %v107 = vmul.f32 %v84, %v100
    %v108 = vmul.f32 %v89, %v100
    %v109 = vmul.f32 %v94, %v100
    %v111 = vlaneseq
    %v112 = vshrl.u32 %v111, 7
    %v113 = vsub.s32 0, %v112
    %v114 = vrot.slane %v47, %v113
    %v116 = vadd.f32 %v102, %v114
    %v117 = vadd.f32 %v103, %v114
    %v118 = vadd.f32 %v104, %v114
    %v119 = vadd.f32 %v105, %v114
    %v120 = vadd.f32 %v106, %v114
    %v121 = vadd.f32 %v107, %v114
    %v122 = vadd.f32 %v108, %v114
    %v123 = vadd.f32 %v109, %v114
    %v124 = vld [vmem:[%s2] sm:$0xff]
    %v125 = vld [vmem:[%s2 + $0x8] sm:$0xff]
    %v126 = vld [vmem:[%s2 + $0x10] sm:$0xff]
    %v127 = vld [vmem:[%s2 + $0x18] sm:$0xff]
    %v128 = vld [vmem:[%s5] sm:$0xff]
    %v129 = vld [vmem:[%s5 + $0x8] sm:$0xff]
    %v130 = vld [vmem:[%s5 + $0x10] sm:$0xff]
    %v131 = vld [vmem:[%s5 + $0x18] sm:$0xff]
    %v132 = vld [vmem:[%s4] sm:$0xff]
    %v133 = vld [vmem:[%s4 + $0x8] sm:$0xff]
    %v134 = vld [vmem:[%s4 + $0x10] sm:$0xff]
    %v135 = vld [vmem:[%s4 + $0x18] sm:$0xff]
    %v136 = vld [vmem:[%s6] sm:$0x1]
    %vm137 = vcmask 261120
    %v139 = vsel %vm137, 0.0, 0
    %141 = vmatprep.subr.mxu0 0.0
    %142 = vmatpush1.msra.mxu0 0.0
    %143 = vmatprep.subr.mxu0 0.0
    %144 = vmatpush1.msra.mxu0 0.0
    %145 = vmatprep.subr.mxu0 0.0
    %146 = vmatpush1.msra.mxu0 0.0
    %147 = vmatprep.subr.mxu0 0.0
    %148 = vmatpush1.msra.mxu0 0.0
    %149 = vmatprep.subr.mxu0 0.0
    %150 = vmatpush1.msra.mxu0 0.0
    %151 = vmatprep.subr.mxu0 0.0
    %152 = vmatpush1.msra.mxu0 0.0
    %153 = vmatprep.subr.mxu0 0.0
    %154 = vmatpush1.msra.mxu0 0.0
    %155 = vmatprep.subr.mxu0 0.0
    %156 = vmatpush1.msra.mxu0 0.0
    %157 = vmatprep.subr.mxu0 0.0
    %158 = vmatpush1.msra.mxu0 0.0
    %159 = vmatprep.subr.mxu0 0.0
    %160 = vmatpush1.msra.mxu0 0.0
    %161 = vmatprep.subr.mxu0 0.0
    %162 = vmatpush1.msra.mxu0 0.0
    %163 = vmatprep.subr.mxu0 0.0
    %164 = vmatpush1.msra.mxu0 0.0
    %165 = vmatprep.subr.mxu0 0.0
    %166 = vmatpush1.msra.mxu0 %v127
    %167 = vmatprep.subr.mxu0 0.0
    %168 = vmatpush1.msra.mxu0 %v126
    %169 = vmatprep.subr.mxu0 0.0
    %170 = vmatpush1.msra.mxu0 %v125
    %171 = vmatprep.subr.mxu0 0.0
    %172 = vmatpush1.msra.mxu0 %v124
    %173 = vmatprep.subr.mxu0 0.0
    %174 = vmatpush2.msra.mxu0 0.0
    %175 = vmatprep.subr.mxu0 0.0
    %176 = vmatpush2.msra.mxu0 0.0
    %177 = vmatprep.subr.mxu0 0.0
    %178 = vmatpush2.msra.mxu0 0.0
    %179 = vmatprep.subr.mxu0 0.0
    %180 = vmatpush2.msra.mxu0 0.0
    %181 = vmatprep.subr.mxu0 0.0
    %182 = vmatpush2.msra.mxu0 0.0
    %183 = vmatprep.subr.mxu0 0.0
    %184 = vmatpush2.msra.mxu0 0.0
    %185 = vmatprep.subr.mxu0 0.0
    %186 = vmatpush2.msra.mxu0 0.0
    %187 = vmatprep.subr.mxu0 0.0
    %188 = vmatpush2.msra.mxu0 0.0
    %189 = vmatprep.subr.mxu0 0.0
    %190 = vmatpush2.msra.mxu0 0.0
    %191 = vmatprep.subr.mxu0 0.0
    %192 = vmatpush2.msra.mxu0 0.0
    %193 = vmatprep.subr.mxu0 0.0
    %194 = vmatpush2.msra.mxu0 0.0
    %195 = vmatprep.subr.mxu0 0.0
    %196 = vmatpush2.msra.mxu0 0.0
    %197 = vmatprep.subr.mxu0 0.0
    %198 = vmatpush2.msra.mxu0 0.0
    %199 = vmatprep.subr.mxu0 0.0
    %200 = vmatpush2.msra.mxu0 0.0
    %201 = vmatprep.subr.mxu0 0.0
    %202 = vmatpush2.msra.mxu0 0.0
    %203 = vmatprep.subr.mxu0 0.0
    %204 = vmatpush2.msra.mxu0 0.0
    %205 = vmatprep.mubr.f32.mxu0 0.0
    %206 = vmatmul.mubr.f32.gmra.mxu0 %v139
    %v207 = vpop.f32.mrf.mxu0
    %v208 = vadd.f32 0.0, %v207
    %v209 = vpop.f32.mrf.mxu0
    %210 = vdwg.mxu0
    %v211 = vadd.f32 %v116, %v208
    %v212 = vxor.u32 %v211, 2147483648
    %v213 = vmul.f32 %v212, 1.442695
    %v214 = vpow.pop %v213
    %v215 = vadd.f32 %v214, 1.0
    %v216 = vrcp.pop %v215
    %v217 = vmul.f32 1.0, %v216
    %v218 = vtanh.pop %v211
    %v219 = vmul.f32 %v217, 0.0
    %221 = vrot.lane.b32.xlu0 %v218, 64
    %v222 = vpop.permute.xlu0 %221
    %v224 = vmul.f32 %v217, %v222
    %226 = vrot.lane.b32.xlu0 %v224, 32
    %v227 = vpop.permute.xlu0 %226
    %v229 = vadd.f32 %v219, %v227
    %v230 = vtanh.pop %v229
    %232 = vrot.lane.b32.xlu0 %v230, 64
    %v233 = vpop.permute.xlu0 %232
    %v235 = vmul.f32 %v217, %v233
    %v237 = vlaneseq
    %v238 = vshrl.u32 %v237, 7
    %v239 = vsub.s32 0, %v238
    %v240 = vrot.slane %v136, %v239
    %243 = vrot.lane.b32.xlu0 %v235, 32
    %v244 = vpop.permute.xlu0 %243
    %v245 = vsel %vm137, %v244, 0
    %247 = vmatprep.subr.mxu0 0.0
    %248 = vmatpush1.msra.mxu0 0.0
    %249 = vmatprep.subr.mxu0 0.0
    %250 = vmatpush1.msra.mxu0 0.0
    %251 = vmatprep.subr.mxu0 0.0
    %252 = vmatpush1.msra.mxu0 0.0
    %253 = vmatprep.subr.mxu0 0.0
    %254 = vmatpush1.msra.mxu0 0.0
    %255 = vmatprep.subr.mxu0 0.0
    %256 = vmatpush1.msra.mxu0 0.0
    %257 = vmatprep.subr.mxu0 0.0
    %258 = vmatpush1.msra.mxu0 0.0
    %259 = vmatprep.subr.mxu0 0.0
    %260 = vmatpush1.msra.mxu0 0.0
    %261 = vmatprep.subr.mxu0 0.0
    %262 = vmatpush1.msra.mxu0 0.0
    %263 = vmatprep.subr.mxu0 0.0
    %264 = vmatpush1.msra.mxu0 0.0
    %265 = vmatprep.subr.mxu0 0.0
    %266 = vmatpush1.msra.mxu0 0.0
    %267 = vmatprep.subr.mxu0 0.0
    %268 = vmatpush1.msra.mxu0 0.0
    %269 = vmatprep.subr.mxu0 0.0
    %270 = vmatpush1.msra.mxu0 0.0
    %271 = vmatprep.subr.mxu0 0.0
    %272 = vmatpush1.msra.mxu0 %v135
    %273 = vmatprep.subr.mxu0 0.0
    %274 = vmatpush1.msra.mxu0 %v134
    %275 = vmatprep.subr.mxu0 0.0
    %276 = vmatpush1.msra.mxu0 %v133
    %277 = vmatprep.subr.mxu0 0.0
    %278 = vmatpush1.msra.mxu0 %v132
    %279 = vmatprep.subr.mxu0 0.0
    %280 = vmatpush2.msra.mxu0 0.0
    %281 = vmatprep.subr.mxu0 0.0
    %282 = vmatpush2.msra.mxu0 0.0
    %283 = vmatprep.subr.mxu0 0.0
    %284 = vmatpush2.msra.mxu0 0.0
    %285 = vmatprep.subr.mxu0 0.0
    %286 = vmatpush2.msra.mxu0 0.0
    %287 = vmatprep.subr.mxu0 0.0
    %288 = vmatpush2.msra.mxu0 0.0
    %289 = vmatprep.subr.mxu0 0.0
    %290 = vmatpush2.msra.mxu0 0.0
    %291 = vmatprep.subr.mxu0 0.0
    %292 = vmatpush2.msra.mxu0 0.0
    %293 = vmatprep.subr.mxu0 0.0
    %294 = vmatpush2.msra.mxu0 0.0
    %295 = vmatprep.subr.mxu0 0.0
    %296 = vmatpush2.msra.mxu0 0.0
    %297 = vmatprep.subr.mxu0 0.0
    %298 = vmatpush2.msra.mxu0 0.0
    %299 = vmatprep.subr.mxu0 0.0
    %300 = vmatpush2.msra.mxu0 0.0
    %301 = vmatprep.subr.mxu0 0.0
    %302 = vmatpush2.msra.mxu0 0.0
    %303 = vmatprep.subr.mxu0 0.0
    %304 = vmatpush2.msra.mxu0 0.0
    %305 = vmatprep.subr.mxu0 0.0
    %306 = vmatpush2.msra.mxu0 0.0
    %307 = vmatprep.subr.mxu0 0.0
    %308 = vmatpush2.msra.mxu0 0.0
    %309 = vmatprep.subr.mxu0 0.0
    %310 = vmatpush2.msra.mxu0 0.0
    %311 = vmatprep.mubr.f32.mxu0 0.0
    %312 = vmatmul.mubr.f32.gmra.mxu0 %v245
    %v313 = vpop.f32.mrf.mxu0
    %v314 = vadd.f32 %v240, %v313
    %v315 = vpop.f32.mrf.mxu0
    %316 = vdwg.mxu0
    %317 = vmatprep.subr.mxu0 0.0
    %318 = vmatpush1.msra.mxu0 0.0
    %319 = vmatprep.subr.mxu0 0.0
    %320 = vmatpush1.msra.mxu0 0.0
    %321 = vmatprep.subr.mxu0 0.0
    %322 = vmatpush1.msra.mxu0 0.0
    %323 = vmatprep.subr.mxu0 0.0
    %324 = vmatpush1.msra.mxu0 0.0
    %325 = vmatprep.subr.mxu0 0.0
    %326 = vmatpush1.msra.mxu0 0.0
    %327 = vmatprep.subr.mxu0 0.0
    %328 = vmatpush1.msra.mxu0 0.0
    %329 = vmatprep.subr.mxu0 0.0
    %330 = vmatpush1.msra.mxu0 0.0
    %331 = vmatprep.subr.mxu0 0.0
    %332 = vmatpush1.msra.mxu0 0.0
    %333 = vmatprep.subr.mxu0 0.0
    %334 = vmatpush1.msra.mxu0 0.0
    %335 = vmatprep.subr.mxu0 0.0
    %336 = vmatpush1.msra.mxu0 0.0
    %337 = vmatprep.subr.mxu0 0.0
    %338 = vmatpush1.msra.mxu0 0.0
    %339 = vmatprep.subr.mxu0 0.0
    %340 = vmatpush1.msra.mxu0 0.0
    %341 = vmatprep.subr.mxu0 0.0
    %342 = vmatpush1.msra.mxu0 %v131
    %343 = vmatprep.subr.mxu0 0.0
    %344 = vmatpush1.msra.mxu0 %v130
    %345 = vmatprep.subr.mxu0 0.0
    %346 = vmatpush1.msra.mxu0 %v129
    %347 = vmatprep.subr.mxu0 0.0
    %348 = vmatpush1.msra.mxu0 %v128
    %349 = vmatprep.subr.mxu0 0.0
    %350 = vmatpush2.msra.mxu0 0.0
    %351 = vmatprep.subr.mxu0 0.0
    %352 = vmatpush2.msra.mxu0 0.0
    %353 = vmatprep.subr.mxu0 0.0
    %354 = vmatpush2.msra.mxu0 0.0
    %355 = vmatprep.subr.mxu0 0.0
    %356 = vmatpush2.msra.mxu0 0.0
    %357 = vmatprep.subr.mxu0 0.0
    %358 = vmatpush2.msra.mxu0 0.0
    %359 = vmatprep.subr.mxu0 0.0
    %360 = vmatpush2.msra.mxu0 0.0
    %361 = vmatprep.subr.mxu0 0.0
    %362 = vmatpush2.msra.mxu0 0.0
    %363 = vmatprep.subr.mxu0 0.0
    %364 = vmatpush2.msra.mxu0 0.0
    %365 = vmatprep.subr.mxu0 0.0
    %366 = vmatpush2.msra.mxu0 0.0
    %367 = vmatprep.subr.mxu0 0.0
    %368 = vmatpush2.msra.mxu0 0.0
    %369 = vmatprep.subr.mxu0 0.0
    %370 = vmatpush2.msra.mxu0 0.0
    %371 = vmatprep.subr.mxu0 0.0
    %372 = vmatpush2.msra.mxu0 0.0
    %373 = vmatprep.subr.mxu0 0.0
    %374 = vmatpush2.msra.mxu0 0.0
    %375 = vmatprep.subr.mxu0 0.0
    %376 = vmatpush2.msra.mxu0 0.0
    %377 = vmatprep.subr.mxu0 0.0
    %378 = vmatpush2.msra.mxu0 0.0
    %379 = vmatprep.subr.mxu0 0.0
    %380 = vmatpush2.msra.mxu0 0.0
    %381 = vmatprep.mubr.f32.mxu0 0.0
    %382 = vmatmul.mubr.f32.gmra.mxu0 %v139
    %v383 = vpop.f32.mrf.mxu0
    %v384 = vadd.f32 0.0, %v383
    %v385 = vpop.f32.mrf.mxu0
    %386 = vdwg.mxu0
    %v387 = vadd.f32 %v314, %v384
    %v388 = vxor.u32 %v387, 2147483648
    %v389 = vmul.f32 %v388, 1.442695
    %v390 = vpow.pop %v389
    %v391 = vadd.f32 %v390, 1.0
    %v392 = vrcp.pop %v391
    %v393 = vmul.f32 1.0, %v392
    %v394 = vtanh.pop %v387
    %v395 = vmul.f32 %v393, 0.0
    %397 = vrot.lane.b32.xlu0 %v394, 64
    %v398 = vpop.permute.xlu0 %397
    %v400 = vmul.f32 %v393, %v398
    %402 = vrot.lane.b32.xlu0 %v400, 32
    %v403 = vpop.permute.xlu0 %402
    %v405 = vadd.f32 %v395, %v403
    %v406 = vtanh.pop %v405
    %408 = vrot.lane.b32.xlu0 %v406, 64
    %v409 = vpop.permute.xlu0 %408
    %v411 = vmul.f32 %v393, %v409
    %412 = vmatprep.subr.mxu0 0.0
    %413 = vmatpush1.msra.mxu0 0.0
    %414 = vmatprep.subr.mxu0 0.0
    %415 = vmatpush1.msra.mxu0 0.0
    %416 = vmatprep.subr.mxu0 0.0
    %417 = vmatpush1.msra.mxu0 0.0
    %418 = vmatprep.subr.mxu0 0.0
    %419 = vmatpush1.msra.mxu0 0.0
    %420 = vmatprep.subr.mxu0 0.0
    %421 = vmatpush1.msra.mxu0 0.0
    %422 = vmatprep.subr.mxu0 0.0
    %423 = vmatpush1.msra.mxu0 0.0
    %424 = vmatprep.subr.mxu0 0.0
    %425 = vmatpush1.msra.mxu0 0.0
    %426 = vmatprep.subr.mxu0 0.0
    %427 = vmatpush1.msra.mxu0 0.0
    %428 = vmatprep.subr.mxu0 0.0
    %429 = vmatpush1.msra.mxu0 0.0
    %430 = vmatprep.subr.mxu0 0.0
    %431 = vmatpush1.msra.mxu0 0.0
    %432 = vmatprep.subr.mxu0 0.0
    %433 = vmatpush1.msra.mxu0 0.0
    %434 = vmatprep.subr.mxu0 0.0
    %435 = vmatpush1.msra.mxu0 0.0
    %436 = vmatprep.subr.mxu0 0.0
    %437 = vmatpush1.msra.mxu0 %v127
    %438 = vmatprep.subr.mxu0 0.0
    %439 = vmatpush1.msra.mxu0 %v126
    %440 = vmatprep.subr.mxu0 0.0
    %441 = vmatpush1.msra.mxu0 %v125
    %442 = vmatprep.subr.mxu0 0.0
    %443 = vmatpush1.msra.mxu0 %v124
    %444 = vmatprep.subr.mxu0 0.0
    %445 = vmatpush2.msra.mxu0 0.0
    %446 = vmatprep.subr.mxu0 0.0
    %447 = vmatpush2.msra.mxu0 0.0
    %448 = vmatprep.subr.mxu0 0.0
    %449 = vmatpush2.msra.mxu0 0.0
    %450 = vmatprep.subr.mxu0 0.0
    %451 = vmatpush2.msra.mxu0 0.0
    %452 = vmatprep.subr.mxu0 0.0
    %453 = vmatpush2.msra.mxu0 0.0
    %454 = vmatprep.subr.mxu0 0.0
    %455 = vmatpush2.msra.mxu0 0.0
    %456 = vmatprep.subr.mxu0 0.0
    %457 = vmatpush2.msra.mxu0 0.0
    %458 = vmatprep.subr.mxu0 0.0
    %459 = vmatpush2.msra.mxu0 0.0
    %460 = vmatprep.subr.mxu0 0.0
    %461 = vmatpush2.msra.mxu0 0.0
    %462 = vmatprep.subr.mxu0 0.0
    %463 = vmatpush2.msra.mxu0 0.0
    %464 = vmatprep.subr.mxu0 0.0
    %465 = vmatpush2.msra.mxu0 0.0
    %466 = vmatprep.subr.mxu0 0.0
    %467 = vmatpush2.msra.mxu0 0.0
    %468 = vmatprep.subr.mxu0 0.0
    %469 = vmatpush2.msra.mxu0 0.0
    %470 = vmatprep.subr.mxu0 0.0
    %471 = vmatpush2.msra.mxu0 0.0
    %472 = vmatprep.subr.mxu0 0.0
    %473 = vmatpush2.msra.mxu0 0.0
    %474 = vmatprep.subr.mxu0 0.0
    %475 = vmatpush2.msra.mxu0 0.0
    %476 = vmatprep.mubr.f32.mxu0 0.0
    %477 = vmatmul.mubr.f32.gmra.mxu0 %v245
    %v478 = vpop.f32.mrf.mxu0
    %v479 = vadd.f32 0.0, %v478
    %v480 = vpop.f32.mrf.mxu0
    %481 = vdwg.mxu0
    %v482 = vadd.f32 %v117, %v479
    %v483 = vxor.u32 %v482, 2147483648
    %v484 = vmul.f32 %v483, 1.442695
    %v485 = vpow.pop %v484
    %v486 = vadd.f32 %v485, 1.0
    %v487 = vrcp.pop %v486
    %v488 = vmul.f32 1.0, %v487
    %v489 = vtanh.pop %v482
    %v490 = vmul.f32 %v488, %v229
    %492 = vrot.lane.b32.xlu0 %v489, 64
    %v493 = vpop.permute.xlu0 %492
    %v495 = vmul.f32 %v488, %v493
    %497 = vrot.lane.b32.xlu0 %v495, 32
    %v498 = vpop.permute.xlu0 %497
    %v500 = vadd.f32 %v490, %v498
    %v501 = vtanh.pop %v500
    %503 = vrot.lane.b32.xlu0 %v501, 64
    %v504 = vpop.permute.xlu0 %503
    %v506 = vmul.f32 %v488, %v504
    %508 = vrot.lane.b32.xlu0 %v506, 32
    %v509 = vpop.permute.xlu0 %508
    %v510 = vsel %vm137, %v509, 0
    %512 = vmatprep.subr.mxu0 0.0
    %513 = vmatpush1.msra.mxu0 0.0
    %514 = vmatprep.subr.mxu0 0.0
    %515 = vmatpush1.msra.mxu0 0.0
    %516 = vmatprep.subr.mxu0 0.0
    %517 = vmatpush1.msra.mxu0 0.0
    %518 = vmatprep.subr.mxu0 0.0
    %519 = vmatpush1.msra.mxu0 0.0
    %520 = vmatprep.subr.mxu0 0.0
    %521 = vmatpush1.msra.mxu0 0.0
    %522 = vmatprep.subr.mxu0 0.0
    %523 = vmatpush1.msra.mxu0 0.0
    %524 = vmatprep.subr.mxu0 0.0
    %525 = vmatpush1.msra.mxu0 0.0
    %526 = vmatprep.subr.mxu0 0.0
    %527 = vmatpush1.msra.mxu0 0.0
    %528 = vmatprep.subr.mxu0 0.0
    %529 = vmatpush1.msra.mxu0 0.0
    %530 = vmatprep.subr.mxu0 0.0
    %531 = vmatpush1.msra.mxu0 0.0
    %532 = vmatprep.subr.mxu0 0.0
    %533 = vmatpush1.msra.mxu0 0.0
    %534 = vmatprep.subr.mxu0 0.0
    %535 = vmatpush1.msra.mxu0 0.0
    %536 = vmatprep.subr.mxu0 0.0
    %537 = vmatpush1.msra.mxu0 %v135
    %538 = vmatprep.subr.mxu0 0.0
    %539 = vmatpush1.msra.mxu0 %v134
    %540 = vmatprep.subr.mxu0 0.0
    %541 = vmatpush1.msra.mxu0 %v133
    %542 = vmatprep.subr.mxu0 0.0
    %543 = vmatpush1.msra.mxu0 %v132
    %544 = vmatprep.subr.mxu0 0.0
    %545 = vmatpush2.msra.mxu0 0.0
    %546 = vmatprep.subr.mxu0 0.0
    %547 = vmatpush2.msra.mxu0 0.0
    %548 = vmatprep.subr.mxu0 0.0
    %549 = vmatpush2.msra.mxu0 0.0
    %550 = vmatprep.subr.mxu0 0.0
    %551 = vmatpush2.msra.mxu0 0.0
    %552 = vmatprep.subr.mxu0 0.0
    %553 = vmatpush2.msra.mxu0 0.0
    %554 = vmatprep.subr.mxu0 0.0
    %555 = vmatpush2.msra.mxu0 0.0
    %556 = vmatprep.subr.mxu0 0.0
    %557 = vmatpush2.msra.mxu0 0.0
    %558 = vmatprep.subr.mxu0 0.0
    %559 = vmatpush2.msra.mxu0 0.0
    %560 = vmatprep.subr.mxu0 0.0
    %561 = vmatpush2.msra.mxu0 0.0
    %562 = vmatprep.subr.mxu0 0.0
    %563 = vmatpush2.msra.mxu0 0.0
    %564 = vmatprep.subr.mxu0 0.0
    %565 = vmatpush2.msra.mxu0 0.0
    %566 = vmatprep.subr.mxu0 0.0
    %567 = vmatpush2.msra.mxu0 0.0
    %568 = vmatprep.subr.mxu0 0.0
    %569 = vmatpush2.msra.mxu0 0.0
    %570 = vmatprep.subr.mxu0 0.0
    %571 = vmatpush2.msra.mxu0 0.0
    %572 = vmatprep.subr.mxu0 0.0
    %573 = vmatpush2.msra.mxu0 0.0
    %574 = vmatprep.subr.mxu0 0.0
    %575 = vmatpush2.msra.mxu0 0.0
    %576 = vmatprep.mubr.f32.mxu0 0.0
    %577 = vmatmul.mubr.f32.gmra.mxu0 %v510
    %v578 = vpop.f32.mrf.mxu0
    %v579 = vadd.f32 %v240, %v578
    %v580 = vpop.f32.mrf.mxu0
    %581 = vdwg.mxu0
    %583 = vrot.lane.b32.xlu0 %v411, 32
    %v584 = vpop.permute.xlu0 %583
    %v585 = vsel %vm137, %v584, 0
    %587 = vmatprep.subr.mxu0 0.0
    %588 = vmatpush1.msra.mxu0 0.0
    %589 = vmatprep.subr.mxu0 0.0
    %590 = vmatpush1.msra.mxu0 0.0
    %591 = vmatprep.subr.mxu0 0.0
    %592 = vmatpush1.msra.mxu0 0.0
    %593 = vmatprep.subr.mxu0 0.0
    %594 = vmatpush1.msra.mxu0 0.0
    %595 = vmatprep.subr.mxu0 0.0
    %596 = vmatpush1.msra.mxu0 0.0
    %597 = vmatprep.subr.mxu0 0.0
    %598 = vmatpush1.msra.mxu0 0.0
    %599 = vmatprep.subr.mxu0 0.0
    %600 = vmatpush1.msra.mxu0 0.0
    %601 = vmatprep.subr.mxu0 0.0
    %602 = vmatpush1.msra.mxu0 0.0
    %603 = vmatprep.subr.mxu0 0.0
    %604 = vmatpush1.msra.mxu0 0.0
    %605 = vmatprep.subr.mxu0 0.0
    %606 = vmatpush1.msra.mxu0 0.0
    %607 = vmatprep.subr.mxu0 0.0
    %608 = vmatpush1.msra.mxu0 0.0
    %609 = vmatprep.subr.mxu0 0.0
    %610 = vmatpush1.msra.mxu0 0.0
    %611 = vmatprep.subr.mxu0 0.0
    %612 = vmatpush1.msra.mxu0 %v131
    %613 = vmatprep.subr.mxu0 0.0
    %614 = vmatpush1.msra.mxu0 %v130
    %615 = vmatprep.subr.mxu0 0.0
    %616 = vmatpush1.msra.mxu0 %v129
    %617 = vmatprep.subr.mxu0 0.0
    %618 = vmatpush1.msra.mxu0 %v128
    %619 = vmatprep.subr.mxu0 0.0
    %620 = vmatpush2.msra.mxu0 0.0
    %621 = vmatprep.subr.mxu0 0.0
    %622 = vmatpush2.msra.mxu0 0.0
    %623 = vmatprep.subr.mxu0 0.0
    %624 = vmatpush2.msra.mxu0 0.0
    %625 = vmatprep.subr.mxu0 0.0
    %626 = vmatpush2.msra.mxu0 0.0
    %627 = vmatprep.subr.mxu0 0.0
    %628 = vmatpush2.msra.mxu0 0.0
    %629 = vmatprep.subr.mxu0 0.0
    %630 = vmatpush2.msra.mxu0 0.0
    %631 = vmatprep.subr.mxu0 0.0
    %632 = vmatpush2.msra.mxu0 0.0
    %633 = vmatprep.subr.mxu0 0.0
    %634 = vmatpush2.msra.mxu0 0.0
    %635 = vmatprep.subr.mxu0 0.0
    %636 = vmatpush2.msra.mxu0 0.0
    %637 = vmatprep.subr.mxu0 0.0
    %638 = vmatpush2.msra.mxu0 0.0
    %639 = vmatprep.subr.mxu0 0.0
    %640 = vmatpush2.msra.mxu0 0.0
    %641 = vmatprep.subr.mxu0 0.0
    %642 = vmatpush2.msra.mxu0 0.0
    %643 = vmatprep.subr.mxu0 0.0
    %644 = vmatpush2.msra.mxu0 0.0
    %645 = vmatprep.subr.mxu0 0.0
    %646 = vmatpush2.msra.mxu0 0.0
    %647 = vmatprep.subr.mxu0 0.0
    %648 = vmatpush2.msra.mxu0 0.0
    %649 = vmatprep.subr.mxu0 0.0
    %650 = vmatpush2.msra.mxu0 0.0
    %651 = vmatprep.mubr.f32.mxu0 0.0
    %652 = vmatmul.mubr.f32.gmra.mxu0 %v585
    %v653 = vpop.f32.mrf.mxu0
    %v654 = vadd.f32 0.0, %v653
    %v655 = vpop.f32.mrf.mxu0
    %656 = vdwg.mxu0
    %v657 = vadd.f32 %v579, %v654
    %v658 = vxor.u32 %v657, 2147483648
    %v659 = vmul.f32 %v658, 1.442695
    %v660 = vpow.pop %v659
    %v661 = vadd.f32 %v660, 1.0
    %v662 = vrcp.pop %v661
    %v663 = vmul.f32 1.0, %v662
    %v664 = vtanh.pop %v657
    %v665 = vmul.f32 %v663, %v405
    %667 = vrot.lane.b32.xlu0 %v664, 64
    %v668 = vpop.permute.xlu0 %667
    %v670 = vmul.f32 %v663, %v668
    %672 = vrot.lane.b32.xlu0 %v670, 32
    %v673 = vpop.permute.xlu0 %672
    %v675 = vadd.f32 %v665, %v673
    %v676 = vtanh.pop %v675
    %678 = vrot.lane.b32.xlu0 %v676, 64
    %v679 = vpop.permute.xlu0 %678
    %v681 = vmul.f32 %v663, %v679
    %682 = vmatprep.subr.mxu0 0.0
    %683 = vmatpush1.msra.mxu0 0.0
    %684 = vmatprep.subr.mxu0 0.0
    %685 = vmatpush1.msra.mxu0 0.0
    %686 = vmatprep.subr.mxu0 0.0
    %687 = vmatpush1.msra.mxu0 0.0
    %688 = vmatprep.subr.mxu0 0.0
    %689 = vmatpush1.msra.mxu0 0.0
    %690 = vmatprep.subr.mxu0 0.0
    %691 = vmatpush1.msra.mxu0 0.0
    %692 = vmatprep.subr.mxu0 0.0
    %693 = vmatpush1.msra.mxu0 0.0
    %694 = vmatprep.subr.mxu0 0.0
    %695 = vmatpush1.msra.mxu0 0.0
    %696 = vmatprep.subr.mxu0 0.0
    %697 = vmatpush1.msra.mxu0 0.0
    %698 = vmatprep.subr.mxu0 0.0
    %699 = vmatpush1.msra.mxu0 0.0
    %700 = vmatprep.subr.mxu0 0.0
    %701 = vmatpush1.msra.mxu0 0.0
    %702 = vmatprep.subr.mxu0 0.0
    %703 = vmatpush1.msra.mxu0 0.0
    %704 = vmatprep.subr.mxu0 0.0
    %705 = vmatpush1.msra.mxu0 0.0
    %706 = vmatprep.subr.mxu0 0.0
    %707 = vmatpush1.msra.mxu0 %v127
    %708 = vmatprep.subr.mxu0 0.0
    %709 = vmatpush1.msra.mxu0 %v126
    %710 = vmatprep.subr.mxu0 0.0
    %711 = vmatpush1.msra.mxu0 %v125
    %712 = vmatprep.subr.mxu0 0.0
    %713 = vmatpush1.msra.mxu0 %v124
    %714 = vmatprep.subr.mxu0 0.0
    %715 = vmatpush2.msra.mxu0 0.0
    %716 = vmatprep.subr.mxu0 0.0
    %717 = vmatpush2.msra.mxu0 0.0
    %718 = vmatprep.subr.mxu0 0.0
    %719 = vmatpush2.msra.mxu0 0.0
    %720 = vmatprep.subr.mxu0 0.0
    %721 = vmatpush2.msra.mxu0 0.0
    %722 = vmatprep.subr.mxu0 0.0
    %723 = vmatpush2.msra.mxu0 0.0
    %724 = vmatprep.subr.mxu0 0.0
    %725 = vmatpush2.msra.mxu0 0.0
    %726 = vmatprep.subr.mxu0 0.0
    %727 = vmatpush2.msra.mxu0 0.0
    %728 = vmatprep.subr.mxu0 0.0
    %729 = vmatpush2.msra.mxu0 0.0
    %730 = vmatprep.subr.mxu0 0.0
    %731 = vmatpush2.msra.mxu0 0.0
    %732 = vmatprep.subr.mxu0 0.0
    %733 = vmatpush2.msra.mxu0 0.0
    %734 = vmatprep.subr.mxu0 0.0
    %735 = vmatpush2.msra.mxu0 0.0
    %736 = vmatprep.subr.mxu0 0.0
    %737 = vmatpush2.msra.mxu0 0.0
    %738 = vmatprep.subr.mxu0 0.0
    %739 = vmatpush2.msra.mxu0 0.0
    %740 = vmatprep.subr.mxu0 0.0
    %741 = vmatpush2.msra.mxu0 0.0
    %742 = vmatprep.subr.mxu0 0.0
    %743 = vmatpush2.msra.mxu0 0.0
    %744 = vmatprep.subr.mxu0 0.0
    %745 = vmatpush2.msra.mxu0 0.0
    %746 = vmatprep.mubr.f32.mxu0 0.0
    %747 = vmatmul.mubr.f32.gmra.mxu0 %v510
    %v748 = vpop.f32.mrf.mxu0
    %v749 = vadd.f32 0.0, %v748
    %v750 = vpop.f32.mrf.mxu0
    %751 = vdwg.mxu0
    %v752 = vadd.f32 %v118, %v749
    %v753 = vxor.u32 %v752, 2147483648
    %v754 = vmul.f32 %v753, 1.442695
    %v755 = vpow.pop %v754
    %v756 = vadd.f32 %v755, 1.0
    %v757 = vrcp.pop %v756
    %v758 = vmul.f32 1.0, %v757
    %v759 = vtanh.pop %v752
    %v760 = vmul.f32 %v758, %v500
    %762 = vrot.lane.b32.xlu0 %v759, 64
    %v763 = vpop.permute.xlu0 %762
    %v765 = vmul.f32 %v758, %v763
    %767 = vrot.lane.b32.xlu0 %v765, 32
    %v768 = vpop.permute.xlu0 %767
    %v770 = vadd.f32 %v760, %v768
    %v771 = vtanh.pop %v770
    %773 = vrot.lane.b32.xlu0 %v771, 64
    %v774 = vpop.permute.xlu0 %773
    %v776 = vmul.f32 %v758, %v774
    %778 = vrot.lane.b32.xlu0 %v776, 32
    %v779 = vpop.permute.xlu0 %778
    %v780 = vsel %vm137, %v779, 0
    %782 = vmatprep.subr.mxu0 0.0
    %783 = vmatpush1.msra.mxu0 0.0
    %784 = vmatprep.subr.mxu0 0.0
    %785 = vmatpush1.msra.mxu0 0.0
    %786 = vmatprep.subr.mxu0 0.0
    %787 = vmatpush1.msra.mxu0 0.0
    %788 = vmatprep.subr.mxu0 0.0
    %789 = vmatpush1.msra.mxu0 0.0
    %790 = vmatprep.subr.mxu0 0.0
    %791 = vmatpush1.msra.mxu0 0.0
    %792 = vmatprep.subr.mxu0 0.0
    %793 = vmatpush1.msra.mxu0 0.0
    %794 = vmatprep.subr.mxu0 0.0
    %795 = vmatpush1.msra.mxu0 0.0
    %796 = vmatprep.subr.mxu0 0.0
    %797 = vmatpush1.msra.mxu0 0.0
    %798 = vmatprep.subr.mxu0 0.0
    %799 = vmatpush1.msra.mxu0 0.0
    %800 = vmatprep.subr.mxu0 0.0
    %801 = vmatpush1.msra.mxu0 0.0
    %802 = vmatprep.subr.mxu0 0.0
    %803 = vmatpush1.msra.mxu0 0.0
    %804 = vmatprep.subr.mxu0 0.0
    %805 = vmatpush1.msra.mxu0 0.0
    %806 = vmatprep.subr.mxu0 0.0
    %807 = vmatpush1.msra.mxu0 %v135
    %808 = vmatprep.subr.mxu0 0.0
    %809 = vmatpush1.msra.mxu0 %v134
    %810 = vmatprep.subr.mxu0 0.0
    %811 = vmatpush1.msra.mxu0 %v133
    %812 = vmatprep.subr.mxu0 0.0
    %813 = vmatpush1.msra.mxu0 %v132
    %814 = vmatprep.subr.mxu0 0.0
    %815 = vmatpush2.msra.mxu0 0.0
    %816 = vmatprep.subr.mxu0 0.0
    %817 = vmatpush2.msra.mxu0 0.0
    %818 = vmatprep.subr.mxu0 0.0
    %819 = vmatpush2.msra.mxu0 0.0
    %820 = vmatprep.subr.mxu0 0.0
    %821 = vmatpush2.msra.mxu0 0.0
    %822 = vmatprep.subr.mxu0 0.0
    %823 = vmatpush2.msra.mxu0 0.0
    %824 = vmatprep.subr.mxu0 0.0
    %825 = vmatpush2.msra.mxu0 0.0
    %826 = vmatprep.subr.mxu0 0.0
    %827 = vmatpush2.msra.mxu0 0.0
    %828 = vmatprep.subr.mxu0 0.0
    %829 = vmatpush2.msra.mxu0 0.0
    %830 = vmatprep.subr.mxu0 0.0
    %831 = vmatpush2.msra.mxu0 0.0
    %832 = vmatprep.subr.mxu0 0.0
    %833 = vmatpush2.msra.mxu0 0.0
    %834 = vmatprep.subr.mxu0 0.0
    %835 = vmatpush2.msra.mxu0 0.0
    %836 = vmatprep.subr.mxu0 0.0
    %837 = vmatpush2.msra.mxu0 0.0
    %838 = vmatprep.subr.mxu0 0.0
    %839 = vmatpush2.msra.mxu0 0.0
    %840 = vmatprep.subr.mxu0 0.0
    %841 = vmatpush2.msra.mxu0 0.0
    %842 = vmatprep.subr.mxu0 0.0
    %843 = vmatpush2.msra.mxu0 0.0
    %844 = vmatprep.subr.mxu0 0.0
    %845 = vmatpush2.msra.mxu0 0.0
    %846 = vmatprep.mubr.f32.mxu0 0.0
    %847 = vmatmul.mubr.f32.gmra.mxu0 %v780
    %v848 = vpop.f32.mrf.mxu0
    %v849 = vadd.f32 %v240, %v848
    %v850 = vpop.f32.mrf.mxu0
    %851 = vdwg.mxu0
    %853 = vrot.lane.b32.xlu0 %v681, 32
    %v854 = vpop.permute.xlu0 %853
    %v855 = vsel %vm137, %v854, 0
    %857 = vmatprep.subr.mxu0 0.0
    %858 = vmatpush1.msra.mxu0 0.0
    %859 = vmatprep.subr.mxu0 0.0
    %860 = vmatpush1.msra.mxu0 0.0
    %861 = vmatprep.subr.mxu0 0.0
    %862 = vmatpush1.msra.mxu0 0.0
    %863 = vmatprep.subr.mxu0 0.0
    %864 = vmatpush1.msra.mxu0 0.0
    %865 = vmatprep.subr.mxu0 0.0
    %866 = vmatpush1.msra.mxu0 0.0
    %867 = vmatprep.subr.mxu0 0.0
    %868 = vmatpush1.msra.mxu0 0.0
    %869 = vmatprep.subr.mxu0 0.0
    %870 = vmatpush1.msra.mxu0 0.0
    %871 = vmatprep.subr.mxu0 0.0
    %872 = vmatpush1.msra.mxu0 0.0
    %873 = vmatprep.subr.mxu0 0.0
    %874 = vmatpush1.msra.mxu0 0.0
    %875 = vmatprep.subr.mxu0 0.0
    %876 = vmatpush1.msra.mxu0 0.0
    %877 = vmatprep.subr.mxu0 0.0
    %878 = vmatpush1.msra.mxu0 0.0
    %879 = vmatprep.subr.mxu0 0.0
    %880 = vmatpush1.msra.mxu0 0.0
    %881 = vmatprep.subr.mxu0 0.0
    %882 = vmatpush1.msra.mxu0 %v131
    %883 = vmatprep.subr.mxu0 0.0
    %884 = vmatpush1.msra.mxu0 %v130
    %885 = vmatprep.subr.mxu0 0.0
    %886 = vmatpush1.msra.mxu0 %v129
    %887 = vmatprep.subr.mxu0 0.0
    %888 = vmatpush1.msra.mxu0 %v128
    %889 = vmatprep.subr.mxu0 0.0
    %890 = vmatpush2.msra.mxu0 0.0
    %891 = vmatprep.subr.mxu0 0.0
    %892 = vmatpush2.msra.mxu0 0.0
    %893 = vmatprep.subr.mxu0 0.0
    %894 = vmatpush2.msra.mxu0 0.0
    %895 = vmatprep.subr.mxu0 0.0
    %896 = vmatpush2.msra.mxu0 0.0
    %897 = vmatprep.subr.mxu0 0.0
    %898 = vmatpush2.msra.mxu0 0.0
    %899 = vmatprep.subr.mxu0 0.0
    %900 = vmatpush2.msra.mxu0 0.0
    %901 = vmatprep.subr.mxu0 0.0
    %902 = vmatpush2.msra.mxu0 0.0
    %903 = vmatprep.subr.mxu0 0.0
    %904 = vmatpush2.msra.mxu0 0.0
    %905 = vmatprep.subr.mxu0 0.0
    %906 = vmatpush2.msra.mxu0 0.0
    %907 = vmatprep.subr.mxu0 0.0
    %908 = vmatpush2.msra.mxu0 0.0
    %909 = vmatprep.subr.mxu0 0.0
    %910 = vmatpush2.msra.mxu0 0.0
    %911 = vmatprep.subr.mxu0 0.0
    %912 = vmatpush2.msra.mxu0 0.0
    %913 = vmatprep.subr.mxu0 0.0
    %914 = vmatpush2.msra.mxu0 0.0
    %915 = vmatprep.subr.mxu0 0.0
    %916 = vmatpush2.msra.mxu0 0.0
    %917 = vmatprep.subr.mxu0 0.0
    %918 = vmatpush2.msra.mxu0 0.0
    %919 = vmatprep.subr.mxu0 0.0
    %920 = vmatpush2.msra.mxu0 0.0
    %921 = vmatprep.mubr.f32.mxu0 0.0
    %922 = vmatmul.mubr.f32.gmra.mxu0 %v855
    %v923 = vpop.f32.mrf.mxu0
    %v924 = vadd.f32 0.0, %v923
    %v925 = vpop.f32.mrf.mxu0
    %926 = vdwg.mxu0
    %v927 = vadd.f32 %v849, %v924
    %v928 = vxor.u32 %v927, 2147483648
    %v929 = vmul.f32 %v928, 1.442695
    %v930 = vpow.pop %v929
    %v931 = vadd.f32 %v930, 1.0
    %v932 = vrcp.pop %v931
    %v933 = vmul.f32 1.0, %v932
    %v934 = vtanh.pop %v927
    %v935 = vmul.f32 %v933, %v675
    %937 = vrot.lane.b32.xlu0 %v934, 64
    %v938 = vpop.permute.xlu0 %937
    %v940 = vmul.f32 %v933, %v938
    %942 = vrot.lane.b32.xlu0 %v940, 32
    %v943 = vpop.permute.xlu0 %942
    %v945 = vadd.f32 %v935, %v943
    %v946 = vtanh.pop %v945
    %948 = vrot.lane.b32.xlu0 %v946, 64
    %v949 = vpop.permute.xlu0 %948
    %v951 = vmul.f32 %v933, %v949
    %952 = vmatprep.subr.mxu0 0.0
    %953 = vmatpush1.msra.mxu0 0.0
    %954 = vmatprep.subr.mxu0 0.0
    %955 = vmatpush1.msra.mxu0 0.0
    %956 = vmatprep.subr.mxu0 0.0
    %957 = vmatpush1.msra.mxu0 0.0
    %958 = vmatprep.subr.mxu0 0.0
    %959 = vmatpush1.msra.mxu0 0.0
    %960 = vmatprep.subr.mxu0 0.0
    %961 = vmatpush1.msra.mxu0 0.0
    %962 = vmatprep.subr.mxu0 0.0
    %963 = vmatpush1.msra.mxu0 0.0
    %964 = vmatprep.subr.mxu0 0.0
    %965 = vmatpush1.msra.mxu0 0.0
    %966 = vmatprep.subr.mxu0 0.0
    %967 = vmatpush1.msra.mxu0 0.0
    %968 = vmatprep.subr.mxu0 0.0
    %969 = vmatpush1.msra.mxu0 0.0
    %970 = vmatprep.subr.mxu0 0.0
    %971 = vmatpush1.msra.mxu0 0.0
    %972 = vmatprep.subr.mxu0 0.0
    %973 = vmatpush1.msra.mxu0 0.0
    %974 = vmatprep.subr.mxu0 0.0
    %975 = vmatpush1.msra.mxu0 0.0
    %976 = vmatprep.subr.mxu0 0.0
    %977 = vmatpush1.msra.mxu0 %v127
    %978 = vmatprep.subr.mxu0 0.0
    %979 = vmatpush1.msra.mxu0 %v126
    %980 = vmatprep.subr.mxu0 0.0
    %981 = vmatpush1.msra.mxu0 %v125
    %982 = vmatprep.subr.mxu0 0.0
    %983 = vmatpush1.msra.mxu0 %v124
    %984 = vmatprep.subr.mxu0 0.0
    %985 = vmatpush2.msra.mxu0 0.0
    %986 = vmatprep.subr.mxu0 0.0
    %987 = vmatpush2.msra.mxu0 0.0
    %988 = vmatprep.subr.mxu0 0.0
    %989 = vmatpush2.msra.mxu0 0.0
    %990 = vmatprep.subr.mxu0 0.0
    %991 = vmatpush2.msra.mxu0 0.0
    %992 = vmatprep.subr.mxu0 0.0
    %993 = vmatpush2.msra.mxu0 0.0
    %994 = vmatprep.subr.mxu0 0.0
    %995 = vmatpush2.msra.mxu0 0.0
    %996 = vmatprep.subr.mxu0 0.0
    %997 = vmatpush2.msra.mxu0 0.0
    %998 = vmatprep.subr.mxu0 0.0
    %999 = vmatpush2.msra.mxu0 0.0
    %1000 = vmatprep.subr.mxu0 0.0
    %1001 = vmatpush2.msra.mxu0 0.0
    %1002 = vmatprep.subr.mxu0 0.0
    %1003 = vmatpush2.msra.mxu0 0.0
    %1004 = vmatprep.subr.mxu0 0.0
    %1005 = vmatpush2.msra.mxu0 0.0
    %1006 = vmatprep.subr.mxu0 0.0
    %1007 = vmatpush2.msra.mxu0 0.0
    %1008 = vmatprep.subr.mxu0 0.0
    %1009 = vmatpush2.msra.mxu0 0.0
    %1010 = vmatprep.subr.mxu0 0.0
    %1011 = vmatpush2.msra.mxu0 0.0
    %1012 = vmatprep.subr.mxu0 0.0
    %1013 = vmatpush2.msra.mxu0 0.0
    %1014 = vmatprep.subr.mxu0 0.0
    %1015 = vmatpush2.msra.mxu0 0.0
    %1016 = vmatprep.mubr.f32.mxu0 0.0
    %1017 = vmatmul.mubr.f32.gmra.mxu0 %v780
    %v1018 = vpop.f32.mrf.mxu0
    %v1019 = vadd.f32 0.0, %v1018
    %v1020 = vpop.f32.mrf.mxu0
    %1021 = vdwg.mxu0
    %v1022 = vadd.f32 %v119, %v1019
    %v1023 = vxor.u32 %v1022, 2147483648
    %v1024 = vmul.f32 %v1023, 1.442695
    %v1025 = vpow.pop %v1024
    %v1026 = vadd.f32 %v1025, 1.0
    %v1027 = vrcp.pop %v1026
    %v1028 = vmul.f32 1.0, %v1027
    %v1029 = vtanh.pop %v1022
    %v1030 = vmul.f32 %v1028, %v770
    %1032 = vrot.lane.b32.xlu0 %v1029, 64
    %v1033 = vpop.permute.xlu0 %1032
    %v1035 = vmul.f32 %v1028, %v1033
    %1037 = vrot.lane.b32.xlu0 %v1035, 32
    %v1038 = vpop.permute.xlu0 %1037
    %v1040 = vadd.f32 %v1030, %v1038
    %v1041 = vtanh.pop %v1040
    %1043 = vrot.lane.b32.xlu0 %v1041, 64
    %v1044 = vpop.permute.xlu0 %1043
    %v1046 = vmul.f32 %v1028, %v1044
    %1048 = vrot.lane.b32.xlu0 %v1046, 32
    %v1049 = vpop.permute.xlu0 %1048
    %v1050 = vsel %vm137, %v1049, 0
    %1052 = vmatprep.subr.mxu0 0.0
    %1053 = vmatpush1.msra.mxu0 0.0
    %1054 = vmatprep.subr.mxu0 0.0
    %1055 = vmatpush1.msra.mxu0 0.0
    %1056 = vmatprep.subr.mxu0 0.0
    %1057 = vmatpush1.msra.mxu0 0.0
    %1058 = vmatprep.subr.mxu0 0.0
    %1059 = vmatpush1.msra.mxu0 0.0
    %1060 = vmatprep.subr.mxu0 0.0
    %1061 = vmatpush1.msra.mxu0 0.0
    %1062 = vmatprep.subr.mxu0 0.0
    %1063 = vmatpush1.msra.mxu0 0.0
    %1064 = vmatprep.subr.mxu0 0.0
    %1065 = vmatpush1.msra.mxu0 0.0
    %1066 = vmatprep.subr.mxu0 0.0
    %1067 = vmatpush1.msra.mxu0 0.0
    %1068 = vmatprep.subr.mxu0 0.0
    %1069 = vmatpush1.msra.mxu0 0.0
    %1070 = vmatprep.subr.mxu0 0.0
    %1071 = vmatpush1.msra.mxu0 0.0
    %1072 = vmatprep.subr.mxu0 0.0
    %1073 = vmatpush1.msra.mxu0 0.0
    %1074 = vmatprep.subr.mxu0 0.0
    %1075 = vmatpush1.msra.mxu0 0.0
    %1076 = vmatprep.subr.mxu0 0.0
    %1077 = vmatpush1.msra.mxu0 %v135
    %1078 = vmatprep.subr.mxu0 0.0
    %1079 = vmatpush1.msra.mxu0 %v134
    %1080 = vmatprep.subr.mxu0 0.0
    %1081 = vmatpush1.msra.mxu0 %v133
    %1082 = vmatprep.subr.mxu0 0.0
    %1083 = vmatpush1.msra.mxu0 %v132
    %1084 = vmatprep.subr.mxu0 0.0
    %1085 = vmatpush2.msra.mxu0 0.0
    %1086 = vmatprep.subr.mxu0 0.0
    %1087 = vmatpush2.msra.mxu0 0.0
    %1088 = vmatprep.subr.mxu0 0.0
    %1089 = vmatpush2.msra.mxu0 0.0
    %1090 = vmatprep.subr.mxu0 0.0
    %1091 = vmatpush2.msra.mxu0 0.0
    %1092 = vmatprep.subr.mxu0 0.0
    %1093 = vmatpush2.msra.mxu0 0.0
    %1094 = vmatprep.subr.mxu0 0.0
    %1095 = vmatpush2.msra.mxu0 0.0
    %1096 = vmatprep.subr.mxu0 0.0
    %1097 = vmatpush2.msra.mxu0 0.0
    %1098 = vmatprep.subr.mxu0 0.0
    %1099 = vmatpush2.msra.mxu0 0.0
    %1100 = vmatprep.subr.mxu0 0.0
    %1101 = vmatpush2.msra.mxu0 0.0
    %1102 = vmatprep.subr.mxu0 0.0
    %1103 = vmatpush2.msra.mxu0 0.0
    %1104 = vmatprep.subr.mxu0 0.0
    %1105 = vmatpush2.msra.mxu0 0.0
    %1106 = vmatprep.subr.mxu0 0.0
    %1107 = vmatpush2.msra.mxu0 0.0
    %1108 = vmatprep.subr.mxu0 0.0
    %1109 = vmatpush2.msra.mxu0 0.0
    %1110 = vmatprep.subr.mxu0 0.0
    %1111 = vmatpush2.msra.mxu0 0.0
    %1112 = vmatprep.subr.mxu0 0.0
    %1113 = vmatpush2.msra.mxu0 0.0
    %1114 = vmatprep.subr.mxu0 0.0
    %1115 = vmatpush2.msra.mxu0 0.0
    %1116 = vmatprep.mubr.f32.mxu0 0.0
    %1117 = vmatmul.mubr.f32.gmra.mxu0 %v1050
    %v1118 = vpop.f32.mrf.mxu0
    %v1119 = vadd.f32 %v240, %v1118
    %v1120 = vpop.f32.mrf.mxu0
    %1121 = vdwg.mxu0
    %1123 = vrot.lane.b32.xlu0 %v951, 32
    %v1124 = vpop.permute.xlu0 %1123
    %v1125 = vsel %vm137, %v1124, 0
    %1127 = vmatprep.subr.mxu0 0.0
    %1128 = vmatpush1.msra.mxu0 0.0
    %1129 = vmatprep.subr.mxu0 0.0
    %1130 = vmatpush1.msra.mxu0 0.0
    %1131 = vmatprep.subr.mxu0 0.0
    %1132 = vmatpush1.msra.mxu0 0.0
    %1133 = vmatprep.subr.mxu0 0.0
    %1134 = vmatpush1.msra.mxu0 0.0
    %1135 = vmatprep.subr.mxu0 0.0
    %1136 = vmatpush1.msra.mxu0 0.0
    %1137 = vmatprep.subr.mxu0 0.0
    %1138 = vmatpush1.msra.mxu0 0.0
    %1139 = vmatprep.subr.mxu0 0.0
    %1140 = vmatpush1.msra.mxu0 0.0
    %1141 = vmatprep.subr.mxu0 0.0
    %1142 = vmatpush1.msra.mxu0 0.0
    %1143 = vmatprep.subr.mxu0 0.0
    %1144 = vmatpush1.msra.mxu0 0.0
    %1145 = vmatprep.subr.mxu0 0.0
    %1146 = vmatpush1.msra.mxu0 0.0
    %1147 = vmatprep.subr.mxu0 0.0
    %1148 = vmatpush1.msra.mxu0 0.0
    %1149 = vmatprep.subr.mxu0 0.0
    %1150 = vmatpush1.msra.mxu0 0.0
    %1151 = vmatprep.subr.mxu0 0.0
    %1152 = vmatpush1.msra.mxu0 %v131
    %1153 = vmatprep.subr.mxu0 0.0
    %1154 = vmatpush1.msra.mxu0 %v130
    %1155 = vmatprep.subr.mxu0 0.0
    %1156 = vmatpush1.msra.mxu0 %v129
    %1157 = vmatprep.subr.mxu0 0.0
    %1158 = vmatpush1.msra.mxu0 %v128
    %1159 = vmatprep.subr.mxu0 0.0
    %1160 = vmatpush2.msra.mxu0 0.0
    %1161 = vmatprep.subr.mxu0 0.0
    %1162 = vmatpush2.msra.mxu0 0.0
    %1163 = vmatprep.subr.mxu0 0.0
    %1164 = vmatpush2.msra.mxu0 0.0
    %1165 = vmatprep.subr.mxu0 0.0
    %1166 = vmatpush2.msra.mxu0 0.0
    %1167 = vmatprep.subr.mxu0 0.0
    %1168 = vmatpush2.msra.mxu0 0.0
    %1169 = vmatprep.subr.mxu0 0.0
    %1170 = vmatpush2.msra.mxu0 0.0
    %1171 = vmatprep.subr.mxu0 0.0
    %1172 = vmatpush2.msra.mxu0 0.0
    %1173 = vmatprep.subr.mxu0 0.0
    %1174 = vmatpush2.msra.mxu0 0.0
    %1175 = vmatprep.subr.mxu0 0.0
    %1176 = vmatpush2.msra.mxu0 0.0
    %1177 = vmatprep.subr.mxu0 0.0
    %1178 = vmatpush2.msra.mxu0 0.0
    %1179 = vmatprep.subr.mxu0 0.0
    %1180 = vmatpush2.msra.mxu0 0.0
    %1181 = vmatprep.subr.mxu0 0.0
    %1182 = vmatpush2.msra.mxu0 0.0
    %1183 = vmatprep.subr.mxu0 0.0
    %1184 = vmatpush2.msra.mxu0 0.0
    %1185 = vmatprep.subr.mxu0 0.0
    %1186 = vmatpush2.msra.mxu0 0.0
    %1187 = vmatprep.subr.mxu0 0.0
    %1188 = vmatpush2.msra.mxu0 0.0
    %1189 = vmatprep.subr.mxu0 0.0
    %1190 = vmatpush2.msra.mxu0 0.0
    %1191 = vmatprep.mubr.f32.mxu0 0.0
    %1192 = vmatmul.mubr.f32.gmra.mxu0 %v1125
    %v1193 = vpop.f32.mrf.mxu0
    %v1194 = vadd.f32 0.0, %v1193
    %v1195 = vpop.f32.mrf.mxu0
    %1196 = vdwg.mxu0
    %v1197 = vadd.f32 %v1119, %v1194
    %v1198 = vxor.u32 %v1197, 2147483648
    %v1199 = vmul.f32 %v1198, 1.442695
    %v1200 = vpow.pop %v1199
    %v1201 = vadd.f32 %v1200, 1.0
    %v1202 = vrcp.pop %v1201
    %v1203 = vmul.f32 1.0, %v1202
    %v1204 = vtanh.pop %v1197
    %v1205 = vmul.f32 %v1203, %v945
    %1207 = vrot.lane.b32.xlu0 %v1204, 64
    %v1208 = vpop.permute.xlu0 %1207
    %v1210 = vmul.f32 %v1203, %v1208
    %1212 = vrot.lane.b32.xlu0 %v1210, 32
    %v1213 = vpop.permute.xlu0 %1212
    %v1215 = vadd.f32 %v1205, %v1213
    %v1216 = vtanh.pop %v1215
    %1218 = vrot.lane.b32.xlu0 %v1216, 64
    %v1219 = vpop.permute.xlu0 %1218
    %v1221 = vmul.f32 %v1203, %v1219
    %1222 = vmatprep.subr.mxu0 0.0
    %1223 = vmatpush1.msra.mxu0 0.0
    %1224 = vmatprep.subr.mxu0 0.0
    %1225 = vmatpush1.msra.mxu0 0.0
    %1226 = vmatprep.subr.mxu0 0.0
    %1227 = vmatpush1.msra.mxu0 0.0
    %1228 = vmatprep.subr.mxu0 0.0
    %1229 = vmatpush1.msra.mxu0 0.0
    %1230 = vmatprep.subr.mxu0 0.0
    %1231 = vmatpush1.msra.mxu0 0.0
    %1232 = vmatprep.subr.mxu0 0.0
    %1233 = vmatpush1.msra.mxu0 0.0
    %1234 = vmatprep.subr.mxu0 0.0
    %1235 = vmatpush1.msra.mxu0 0.0
    %1236 = vmatprep.subr.mxu0 0.0
    %1237 = vmatpush1.msra.mxu0 0.0
    %1238 = vmatprep.subr.mxu0 0.0
    %1239 = vmatpush1.msra.mxu0 0.0
    %1240 = vmatprep.subr.mxu0 0.0
    %1241 = vmatpush1.msra.mxu0 0.0
    %1242 = vmatprep.subr.mxu0 0.0
    %1243 = vmatpush1.msra.mxu0 0.0
    %1244 = vmatprep.subr.mxu0 0.0
    %1245 = vmatpush1.msra.mxu0 0.0
    %1246 = vmatprep.subr.mxu0 0.0
    %1247 = vmatpush1.msra.mxu0 %v127
    %1248 = vmatprep.subr.mxu0 0.0
    %1249 = vmatpush1.msra.mxu0 %v126
    %1250 = vmatprep.subr.mxu0 0.0
    %1251 = vmatpush1.msra.mxu0 %v125
    %1252 = vmatprep.subr.mxu0 0.0
    %1253 = vmatpush1.msra.mxu0 %v124
    %1254 = vmatprep.subr.mxu0 0.0
    %1255 = vmatpush2.msra.mxu0 0.0
    %1256 = vmatprep.subr.mxu0 0.0
    %1257 = vmatpush2.msra.mxu0 0.0
    %1258 = vmatprep.subr.mxu0 0.0
    %1259 = vmatpush2.msra.mxu0 0.0
    %1260 = vmatprep.subr.mxu0 0.0
    %1261 = vmatpush2.msra.mxu0 0.0
    %1262 = vmatprep.subr.mxu0 0.0
    %1263 = vmatpush2.msra.mxu0 0.0
    %1264 = vmatprep.subr.mxu0 0.0
    %1265 = vmatpush2.msra.mxu0 0.0
    %1266 = vmatprep.subr.mxu0 0.0
    %1267 = vmatpush2.msra.mxu0 0.0
    %1268 = vmatprep.subr.mxu0 0.0
    %1269 = vmatpush2.msra.mxu0 0.0
    %1270 = vmatprep.subr.mxu0 0.0
    %1271 = vmatpush2.msra.mxu0 0.0
    %1272 = vmatprep.subr.mxu0 0.0
    %1273 = vmatpush2.msra.mxu0 0.0
    %1274 = vmatprep.subr.mxu0 0.0
    %1275 = vmatpush2.msra.mxu0 0.0
    %1276 = vmatprep.subr.mxu0 0.0
    %1277 = vmatpush2.msra.mxu0 0.0
    %1278 = vmatprep.subr.mxu0 0.0
    %1279 = vmatpush2.msra.mxu0 0.0
    %1280 = vmatprep.subr.mxu0 0.0
    %1281 = vmatpush2.msra.mxu0 0.0
    %1282 = vmatprep.subr.mxu0 0.0
    %1283 = vmatpush2.msra.mxu0 0.0
    %1284 = vmatprep.subr.mxu0 0.0
    %1285 = vmatpush2.msra.mxu0 0.0
    %1286 = vmatprep.mubr.f32.mxu0 0.0
    %1287 = vmatmul.mubr.f32.gmra.mxu0 %v1050
    %v1288 = vpop.f32.mrf.mxu0
    %v1289 = vadd.f32 0.0, %v1288
    %v1290 = vpop.f32.mrf.mxu0
    %1291 = vdwg.mxu0
    %v1292 = vadd.f32 %v120, %v1289
    %v1293 = vxor.u32 %v1292, 2147483648
    %v1294 = vmul.f32 %v1293, 1.442695
    %v1295 = vpow.pop %v1294
    %v1296 = vadd.f32 %v1295, 1.0
    %v1297 = vrcp.pop %v1296
    %v1298 = vmul.f32 1.0, %v1297
    %v1299 = vtanh.pop %v1292
    %v1300 = vmul.f32 %v1298, %v1040
    %1302 = vrot.lane.b32.xlu0 %v1299, 64
    %v1303 = vpop.permute.xlu0 %1302
    %v1305 = vmul.f32 %v1298, %v1303
    %1307 = vrot.lane.b32.xlu0 %v1305, 32
    %v1308 = vpop.permute.xlu0 %1307
    %v1310 = vadd.f32 %v1300, %v1308
    %v1311 = vtanh.pop %v1310
    %1313 = vrot.lane.b32.xlu0 %v1311, 64
    %v1314 = vpop.permute.xlu0 %1313
    %v1316 = vmul.f32 %v1298, %v1314
    %1318 = vrot.lane.b32.xlu0 %v1316, 32
    %v1319 = vpop.permute.xlu0 %1318
    %v1320 = vsel %vm137, %v1319, 0
    %1322 = vmatprep.subr.mxu0 0.0
    %1323 = vmatpush1.msra.mxu0 0.0
    %1324 = vmatprep.subr.mxu0 0.0
    %1325 = vmatpush1.msra.mxu0 0.0
    %1326 = vmatprep.subr.mxu0 0.0
    %1327 = vmatpush1.msra.mxu0 0.0
    %1328 = vmatprep.subr.mxu0 0.0
    %1329 = vmatpush1.msra.mxu0 0.0
    %1330 = vmatprep.subr.mxu0 0.0
    %1331 = vmatpush1.msra.mxu0 0.0
    %1332 = vmatprep.subr.mxu0 0.0
    %1333 = vmatpush1.msra.mxu0 0.0
    %1334 = vmatprep.subr.mxu0 0.0
    %1335 = vmatpush1.msra.mxu0 0.0
    %1336 = vmatprep.subr.mxu0 0.0
    %1337 = vmatpush1.msra.mxu0 0.0
    %1338 = vmatprep.subr.mxu0 0.0
    %1339 = vmatpush1.msra.mxu0 0.0
    %1340 = vmatprep.subr.mxu0 0.0
    %1341 = vmatpush1.msra.mxu0 0.0
    %1342 = vmatprep.subr.mxu0 0.0
    %1343 = vmatpush1.msra.mxu0 0.0
    %1344 = vmatprep.subr.mxu0 0.0
    %1345 = vmatpush1.msra.mxu0 0.0
    %1346 = vmatprep.subr.mxu0 0.0
    %1347 = vmatpush1.msra.mxu0 %v135
    %1348 = vmatprep.subr.mxu0 0.0
    %1349 = vmatpush1.msra.mxu0 %v134
    %1350 = vmatprep.subr.mxu0 0.0
    %1351 = vmatpush1.msra.mxu0 %v133
    %1352 = vmatprep.subr.mxu0 0.0
    %1353 = vmatpush1.msra.mxu0 %v132
    %1354 = vmatprep.subr.mxu0 0.0
    %1355 = vmatpush2.msra.mxu0 0.0
    %1356 = vmatprep.subr.mxu0 0.0
    %1357 = vmatpush2.msra.mxu0 0.0
    %1358 = vmatprep.subr.mxu0 0.0
    %1359 = vmatpush2.msra.mxu0 0.0
    %1360 = vmatprep.subr.mxu0 0.0
    %1361 = vmatpush2.msra.mxu0 0.0
    %1362 = vmatprep.subr.mxu0 0.0
    %1363 = vmatpush2.msra.mxu0 0.0
    %1364 = vmatprep.subr.mxu0 0.0
    %1365 = vmatpush2.msra.mxu0 0.0
    %1366 = vmatprep.subr.mxu0 0.0
    %1367 = vmatpush2.msra.mxu0 0.0
    %1368 = vmatprep.subr.mxu0 0.0
    %1369 = vmatpush2.msra.mxu0 0.0
    %1370 = vmatprep.subr.mxu0 0.0
    %1371 = vmatpush2.msra.mxu0 0.0
    %1372 = vmatprep.subr.mxu0 0.0
    %1373 = vmatpush2.msra.mxu0 0.0
    %1374 = vmatprep.subr.mxu0 0.0
    %1375 = vmatpush2.msra.mxu0 0.0
    %1376 = vmatprep.subr.mxu0 0.0
    %1377 = vmatpush2.msra.mxu0 0.0
    %1378 = vmatprep.subr.mxu0 0.0
    %1379 = vmatpush2.msra.mxu0 0.0
    %1380 = vmatprep.subr.mxu0 0.0
    %1381 = vmatpush2.msra.mxu0 0.0
    %1382 = vmatprep.subr.mxu0 0.0
    %1383 = vmatpush2.msra.mxu0 0.0
    %1384 = vmatprep.subr.mxu0 0.0
    %1385 = vmatpush2.msra.mxu0 0.0
    %1386 = vmatprep.mubr.f32.mxu0 0.0
    %1387 = vmatmul.mubr.f32.gmra.mxu0 %v1320
    %v1388 = vpop.f32.mrf.mxu0
    %v1389 = vadd.f32 %v240, %v1388
    %v1390 = vpop.f32.mrf.mxu0
    %1391 = vdwg.mxu0
    %1393 = vrot.lane.b32.xlu0 %v1221, 32
    %v1394 = vpop.permute.xlu0 %1393
    %v1395 = vsel %vm137, %v1394, 0
    %1397 = vmatprep.subr.mxu0 0.0
    %1398 = vmatpush1.msra.mxu0 0.0
    %1399 = vmatprep.subr.mxu0 0.0
    %1400 = vmatpush1.msra.mxu0 0.0
    %1401 = vmatprep.subr.mxu0 0.0
    %1402 = vmatpush1.msra.mxu0 0.0
    %1403 = vmatprep.subr.mxu0 0.0
    %1404 = vmatpush1.msra.mxu0 0.0
    %1405 = vmatprep.subr.mxu0 0.0
    %1406 = vmatpush1.msra.mxu0 0.0
    %1407 = vmatprep.subr.mxu0 0.0
    %1408 = vmatpush1.msra.mxu0 0.0
    %1409 = vmatprep.subr.mxu0 0.0
    %1410 = vmatpush1.msra.mxu0 0.0
    %1411 = vmatprep.subr.mxu0 0.0
    %1412 = vmatpush1.msra.mxu0 0.0
    %1413 = vmatprep.subr.mxu0 0.0
    %1414 = vmatpush1.msra.mxu0 0.0
    %1415 = vmatprep.subr.mxu0 0.0
    %1416 = vmatpush1.msra.mxu0 0.0
    %1417 = vmatprep.subr.mxu0 0.0
    %1418 = vmatpush1.msra.mxu0 0.0
    %1419 = vmatprep.subr.mxu0 0.0
    %1420 = vmatpush1.msra.mxu0 0.0
    %1421 = vmatprep.subr.mxu0 0.0
    %1422 = vmatpush1.msra.mxu0 %v131
    %1423 = vmatprep.subr.mxu0 0.0
    %1424 = vmatpush1.msra.mxu0 %v130
    %1425 = vmatprep.subr.mxu0 0.0
    %1426 = vmatpush1.msra.mxu0 %v129
    %1427 = vmatprep.subr.mxu0 0.0
    %1428 = vmatpush1.msra.mxu0 %v128
    %1429 = vmatprep.subr.mxu0 0.0
    %1430 = vmatpush2.msra.mxu0 0.0
    %1431 = vmatprep.subr.mxu0 0.0
    %1432 = vmatpush2.msra.mxu0 0.0
    %1433 = vmatprep.subr.mxu0 0.0
    %1434 = vmatpush2.msra.mxu0 0.0
    %1435 = vmatprep.subr.mxu0 0.0
    %1436 = vmatpush2.msra.mxu0 0.0
    %1437 = vmatprep.subr.mxu0 0.0
    %1438 = vmatpush2.msra.mxu0 0.0
    %1439 = vmatprep.subr.mxu0 0.0
    %1440 = vmatpush2.msra.mxu0 0.0
    %1441 = vmatprep.subr.mxu0 0.0
    %1442 = vmatpush2.msra.mxu0 0.0
    %1443 = vmatprep.subr.mxu0 0.0
    %1444 = vmatpush2.msra.mxu0 0.0
    %1445 = vmatprep.subr.mxu0 0.0
    %1446 = vmatpush2.msra.mxu0 0.0
    %1447 = vmatprep.subr.mxu0 0.0
    %1448 = vmatpush2.msra.mxu0 0.0
    %1449 = vmatprep.subr.mxu0 0.0
    %1450 = vmatpush2.msra.mxu0 0.0
    %1451 = vmatprep.subr.mxu0 0.0
    %1452 = vmatpush2.msra.mxu0 0.0
    %1453 = vmatprep.subr.mxu0 0.0
    %1454 = vmatpush2.msra.mxu0 0.0
    %1455 = vmatprep.subr.mxu0 0.0
    %1456 = vmatpush2.msra.mxu0 0.0
    %1457 = vmatprep.subr.mxu0 0.0
    %1458 = vmatpush2.msra.mxu0 0.0
    %1459 = vmatprep.subr.mxu0 0.0
    %1460 = vmatpush2.msra.mxu0 0.0
    %1461 = vmatprep.mubr.f32.mxu0 0.0
    %1462 = vmatmul.mubr.f32.gmra.mxu0 %v1395
    %v1463 = vpop.f32.mrf.mxu0
    %v1464 = vadd.f32 0.0, %v1463
    %v1465 = vpop.f32.mrf.mxu0
    %1466 = vdwg.mxu0
    %v1467 = vadd.f32 %v1389, %v1464
    %v1468 = vxor.u32 %v1467, 2147483648
    %v1469 = vmul.f32 %v1468, 1.442695
    %v1470 = vpow.pop %v1469
    %v1471 = vadd.f32 %v1470, 1.0
    %v1472 = vrcp.pop %v1471
    %v1473 = vmul.f32 1.0, %v1472
    %v1474 = vtanh.pop %v1467
    %v1475 = vmul.f32 %v1473, %v1215
    %1477 = vrot.lane.b32.xlu0 %v1474, 64
    %v1478 = vpop.permute.xlu0 %1477
    %v1480 = vmul.f32 %v1473, %v1478
    %1482 = vrot.lane.b32.xlu0 %v1480, 32
    %v1483 = vpop.permute.xlu0 %1482
    %v1485 = vadd.f32 %v1475, %v1483
    %v1486 = vtanh.pop %v1485
    %1488 = vrot.lane.b32.xlu0 %v1486, 64
    %v1489 = vpop.permute.xlu0 %1488
    %v1491 = vmul.f32 %v1473, %v1489
    %1492 = vmatprep.subr.mxu0 0.0
    %1493 = vmatpush1.msra.mxu0 0.0
    %1494 = vmatprep.subr.mxu0 0.0
    %1495 = vmatpush1.msra.mxu0 0.0
    %1496 = vmatprep.subr.mxu0 0.0
    %1497 = vmatpush1.msra.mxu0 0.0
    %1498 = vmatprep.subr.mxu0 0.0
    %1499 = vmatpush1.msra.mxu0 0.0
    %1500 = vmatprep.subr.mxu0 0.0
    %1501 = vmatpush1.msra.mxu0 0.0
    %1502 = vmatprep.subr.mxu0 0.0
    %1503 = vmatpush1.msra.mxu0 0.0
    %1504 = vmatprep.subr.mxu0 0.0
    %1505 = vmatpush1.msra.mxu0 0.0
    %1506 = vmatprep.subr.mxu0 0.0
    %1507 = vmatpush1.msra.mxu0 0.0
    %1508 = vmatprep.subr.mxu0 0.0
    %1509 = vmatpush1.msra.mxu0 0.0
    %1510 = vmatprep.subr.mxu0 0.0
    %1511 = vmatpush1.msra.mxu0 0.0
    %1512 = vmatprep.subr.mxu0 0.0
    %1513 = vmatpush1.msra.mxu0 0.0
    %1514 = vmatprep.subr.mxu0 0.0
    %1515 = vmatpush1.msra.mxu0 0.0
    %1516 = vmatprep.subr.mxu0 0.0
    %1517 = vmatpush1.msra.mxu0 %v127
    %1518 = vmatprep.subr.mxu0 0.0
    %1519 = vmatpush1.msra.mxu0 %v126
    %1520 = vmatprep.subr.mxu0 0.0
    %1521 = vmatpush1.msra.mxu0 %v125
    %1522 = vmatprep.subr.mxu0 0.0
    %1523 = vmatpush1.msra.mxu0 %v124
    %1524 = vmatprep.subr.mxu0 0.0
    %1525 = vmatpush2.msra.mxu0 0.0
    %1526 = vmatprep.subr.mxu0 0.0
    %1527 = vmatpush2.msra.mxu0 0.0
    %1528 = vmatprep.subr.mxu0 0.0
    %1529 = vmatpush2.msra.mxu0 0.0
    %1530 = vmatprep.subr.mxu0 0.0
    %1531 = vmatpush2.msra.mxu0 0.0
    %1532 = vmatprep.subr.mxu0 0.0
    %1533 = vmatpush2.msra.mxu0 0.0
    %1534 = vmatprep.subr.mxu0 0.0
    %1535 = vmatpush2.msra.mxu0 0.0
    %1536 = vmatprep.subr.mxu0 0.0
    %1537 = vmatpush2.msra.mxu0 0.0
    %1538 = vmatprep.subr.mxu0 0.0
    %1539 = vmatpush2.msra.mxu0 0.0
    %1540 = vmatprep.subr.mxu0 0.0
    %1541 = vmatpush2.msra.mxu0 0.0
    %1542 = vmatprep.subr.mxu0 0.0
    %1543 = vmatpush2.msra.mxu0 0.0
    %1544 = vmatprep.subr.mxu0 0.0
    %1545 = vmatpush2.msra.mxu0 0.0
    %1546 = vmatprep.subr.mxu0 0.0
    %1547 = vmatpush2.msra.mxu0 0.0
    %1548 = vmatprep.subr.mxu0 0.0
    %1549 = vmatpush2.msra.mxu0 0.0
    %1550 = vmatprep.subr.mxu0 0.0
    %1551 = vmatpush2.msra.mxu0 0.0
    %1552 = vmatprep.subr.mxu0 0.0
    %1553 = vmatpush2.msra.mxu0 0.0
    %1554 = vmatprep.subr.mxu0 0.0
    %1555 = vmatpush2.msra.mxu0 0.0
    %1556 = vmatprep.mubr.f32.mxu0 0.0
    %1557 = vmatmul.mubr.f32.gmra.mxu0 %v1320
    %v1558 = vpop.f32.mrf.mxu0
    %v1559 = vadd.f32 0.0, %v1558
    %v1560 = vpop.f32.mrf.mxu0
    %1561 = vdwg.mxu0
    %v1562 = vadd.f32 %v121, %v1559
    %v1563 = vxor.u32 %v1562, 2147483648
    %v1564 = vmul.f32 %v1563, 1.442695
    %v1565 = vpow.pop %v1564
    %v1566 = vadd.f32 %v1565, 1.0
    %v1567 = vrcp.pop %v1566
    %v1568 = vmul.f32 1.0, %v1567
    %v1569 = vtanh.pop %v1562
    %v1570 = vmul.f32 %v1568, %v1310
    %1572 = vrot.lane.b32.xlu0 %v1569, 64
    %v1573 = vpop.permute.xlu0 %1572
    %v1575 = vmul.f32 %v1568, %v1573
    %1577 = vrot.lane.b32.xlu0 %v1575, 32
    %v1578 = vpop.permute.xlu0 %1577
    %v1580 = vadd.f32 %v1570, %v1578
    %v1581 = vtanh.pop %v1580
    %1583 = vrot.lane.b32.xlu0 %v1581, 64
    %v1584 = vpop.permute.xlu0 %1583
    %v1586 = vmul.f32 %v1568, %v1584
    %1588 = vrot.lane.b32.xlu0 %v1586, 32
    %v1589 = vpop.permute.xlu0 %1588
    %v1590 = vsel %vm137, %v1589, 0
    %1592 = vmatprep.subr.mxu0 0.0
    %1593 = vmatpush1.msra.mxu0 0.0
    %1594 = vmatprep.subr.mxu0 0.0
    %1595 = vmatpush1.msra.mxu0 0.0
    %1596 = vmatprep.subr.mxu0 0.0
    %1597 = vmatpush1.msra.mxu0 0.0
    %1598 = vmatprep.subr.mxu0 0.0
    %1599 = vmatpush1.msra.mxu0 0.0
    %1600 = vmatprep.subr.mxu0 0.0
    %1601 = vmatpush1.msra.mxu0 0.0
    %1602 = vmatprep.subr.mxu0 0.0
    %1603 = vmatpush1.msra.mxu0 0.0
    %1604 = vmatprep.subr.mxu0 0.0
    %1605 = vmatpush1.msra.mxu0 0.0
    %1606 = vmatprep.subr.mxu0 0.0
    %1607 = vmatpush1.msra.mxu0 0.0
    %1608 = vmatprep.subr.mxu0 0.0
    %1609 = vmatpush1.msra.mxu0 0.0
    %1610 = vmatprep.subr.mxu0 0.0
    %1611 = vmatpush1.msra.mxu0 0.0
    %1612 = vmatprep.subr.mxu0 0.0
    %1613 = vmatpush1.msra.mxu0 0.0
    %1614 = vmatprep.subr.mxu0 0.0
    %1615 = vmatpush1.msra.mxu0 0.0
    %1616 = vmatprep.subr.mxu0 0.0
    %1617 = vmatpush1.msra.mxu0 %v135
    %1618 = vmatprep.subr.mxu0 0.0
    %1619 = vmatpush1.msra.mxu0 %v134
    %1620 = vmatprep.subr.mxu0 0.0
    %1621 = vmatpush1.msra.mxu0 %v133
    %1622 = vmatprep.subr.mxu0 0.0
    %1623 = vmatpush1.msra.mxu0 %v132
    %1624 = vmatprep.subr.mxu0 0.0
    %1625 = vmatpush2.msra.mxu0 0.0
    %1626 = vmatprep.subr.mxu0 0.0
    %1627 = vmatpush2.msra.mxu0 0.0
    %1628 = vmatprep.subr.mxu0 0.0
    %1629 = vmatpush2.msra.mxu0 0.0
    %1630 = vmatprep.subr.mxu0 0.0
    %1631 = vmatpush2.msra.mxu0 0.0
    %1632 = vmatprep.subr.mxu0 0.0
    %1633 = vmatpush2.msra.mxu0 0.0
    %1634 = vmatprep.subr.mxu0 0.0
    %1635 = vmatpush2.msra.mxu0 0.0
    %1636 = vmatprep.subr.mxu0 0.0
    %1637 = vmatpush2.msra.mxu0 0.0
    %1638 = vmatprep.subr.mxu0 0.0
    %1639 = vmatpush2.msra.mxu0 0.0
    %1640 = vmatprep.subr.mxu0 0.0
    %1641 = vmatpush2.msra.mxu0 0.0
    %1642 = vmatprep.subr.mxu0 0.0
    %1643 = vmatpush2.msra.mxu0 0.0
    %1644 = vmatprep.subr.mxu0 0.0
    %1645 = vmatpush2.msra.mxu0 0.0
    %1646 = vmatprep.subr.mxu0 0.0
    %1647 = vmatpush2.msra.mxu0 0.0
    %1648 = vmatprep.subr.mxu0 0.0
    %1649 = vmatpush2.msra.mxu0 0.0
    %1650 = vmatprep.subr.mxu0 0.0
    %1651 = vmatpush2.msra.mxu0 0.0
    %1652 = vmatprep.subr.mxu0 0.0
    %1653 = vmatpush2.msra.mxu0 0.0
    %1654 = vmatprep.subr.mxu0 0.0
    %1655 = vmatpush2.msra.mxu0 0.0
    %1656 = vmatprep.mubr.f32.mxu0 0.0
    %1657 = vmatmul.mubr.f32.gmra.mxu0 %v1590
    %v1658 = vpop.f32.mrf.mxu0
    %v1659 = vadd.f32 %v240, %v1658
    %v1660 = vpop.f32.mrf.mxu0
    %1661 = vdwg.mxu0
    %1663 = vrot.lane.b32.xlu0 %v1491, 32
    %v1664 = vpop.permute.xlu0 %1663
    %v1665 = vsel %vm137, %v1664, 0
    %1667 = vmatprep.subr.mxu0 0.0
    %1668 = vmatpush1.msra.mxu0 0.0
    %1669 = vmatprep.subr.mxu0 0.0
    %1670 = vmatpush1.msra.mxu0 0.0
    %1671 = vmatprep.subr.mxu0 0.0
    %1672 = vmatpush1.msra.mxu0 0.0
    %1673 = vmatprep.subr.mxu0 0.0
    %1674 = vmatpush1.msra.mxu0 0.0
    %1675 = vmatprep.subr.mxu0 0.0
    %1676 = vmatpush1.msra.mxu0 0.0
    %1677 = vmatprep.subr.mxu0 0.0
    %1678 = vmatpush1.msra.mxu0 0.0
    %1679 = vmatprep.subr.mxu0 0.0
    %1680 = vmatpush1.msra.mxu0 0.0
    %1681 = vmatprep.subr.mxu0 0.0
    %1682 = vmatpush1.msra.mxu0 0.0
    %1683 = vmatprep.subr.mxu0 0.0
    %1684 = vmatpush1.msra.mxu0 0.0
    %1685 = vmatprep.subr.mxu0 0.0
    %1686 = vmatpush1.msra.mxu0 0.0
    %1687 = vmatprep.subr.mxu0 0.0
    %1688 = vmatpush1.msra.mxu0 0.0
    %1689 = vmatprep.subr.mxu0 0.0
    %1690 = vmatpush1.msra.mxu0 0.0
    %1691 = vmatprep.subr.mxu0 0.0
    %1692 = vmatpush1.msra.mxu0 %v131
    %1693 = vmatprep.subr.mxu0 0.0
    %1694 = vmatpush1.msra.mxu0 %v130
    %1695 = vmatprep.subr.mxu0 0.0
    %1696 = vmatpush1.msra.mxu0 %v129
    %1697 = vmatprep.subr.mxu0 0.0
    %1698 = vmatpush1.msra.mxu0 %v128
    %1699 = vmatprep.subr.mxu0 0.0
    %1700 = vmatpush2.msra.mxu0 0.0
    %1701 = vmatprep.subr.mxu0 0.0
    %1702 = vmatpush2.msra.mxu0 0.0
    %1703 = vmatprep.subr.mxu0 0.0
    %1704 = vmatpush2.msra.mxu0 0.0
    %1705 = vmatprep.subr.mxu0 0.0
    %1706 = vmatpush2.msra.mxu0 0.0
    %1707 = vmatprep.subr.mxu0 0.0
    %1708 = vmatpush2.msra.mxu0 0.0
    %1709 = vmatprep.subr.mxu0 0.0
    %1710 = vmatpush2.msra.mxu0 0.0
    %1711 = vmatprep.subr.mxu0 0.0
    %1712 = vmatpush2.msra.mxu0 0.0
    %1713 = vmatprep.subr.mxu0 0.0
    %1714 = vmatpush2.msra.mxu0 0.0
    %1715 = vmatprep.subr.mxu0 0.0
    %1716 = vmatpush2.msra.mxu0 0.0
    %1717 = vmatprep.subr.mxu0 0.0
    %1718 = vmatpush2.msra.mxu0 0.0
    %1719 = vmatprep.subr.mxu0 0.0
    %1720 = vmatpush2.msra.mxu0 0.0
    %1721 = vmatprep.subr.mxu0 0.0
    %1722 = vmatpush2.msra.mxu0 0.0
    %1723 = vmatprep.subr.mxu0 0.0
    %1724 = vmatpush2.msra.mxu0 0.0
    %1725 = vmatprep.subr.mxu0 0.0
    %1726 = vmatpush2.msra.mxu0 0.0
    %1727 = vmatprep.subr.mxu0 0.0
    %1728 = vmatpush2.msra.mxu0 0.0
    %1729 = vmatprep.subr.mxu0 0.0
    %1730 = vmatpush2.msra.mxu0 0.0
    %1731 = vmatprep.mubr.f32.mxu0 0.0
    %1732 = vmatmul.mubr.f32.gmra.mxu0 %v1665
    %v1733 = vpop.f32.mrf.mxu0
    %v1734 = vadd.f32 0.0, %v1733
    %v1735 = vpop.f32.mrf.mxu0
    %1736 = vdwg.mxu0
    %v1737 = vadd.f32 %v1659, %v1734
    %v1738 = vxor.u32 %v1737, 2147483648
    %v1739 = vmul.f32 %v1738, 1.442695
    %v1740 = vpow.pop %v1739
    %v1741 = vadd.f32 %v1740, 1.0
    %v1742 = vrcp.pop %v1741
    %v1743 = vmul.f32 1.0, %v1742
    %v1744 = vtanh.pop %v1737
    %v1745 = vmul.f32 %v1743, %v1485
    %1747 = vrot.lane.b32.xlu0 %v1744, 64
    %v1748 = vpop.permute.xlu0 %1747
    %v1750 = vmul.f32 %v1743, %v1748
    %1752 = vrot.lane.b32.xlu0 %v1750, 32
    %v1753 = vpop.permute.xlu0 %1752
    %v1755 = vadd.f32 %v1745, %v1753
    %v1756 = vtanh.pop %v1755
    %1758 = vrot.lane.b32.xlu0 %v1756, 64
    %v1759 = vpop.permute.xlu0 %1758
    %v1761 = vmul.f32 %v1743, %v1759
    %1762 = vmatprep.subr.mxu0 0.0
    %1763 = vmatpush1.msra.mxu0 0.0
    %1764 = vmatprep.subr.mxu0 0.0
    %1765 = vmatpush1.msra.mxu0 0.0
    %1766 = vmatprep.subr.mxu0 0.0
    %1767 = vmatpush1.msra.mxu0 0.0
    %1768 = vmatprep.subr.mxu0 0.0
    %1769 = vmatpush1.msra.mxu0 0.0
    %1770 = vmatprep.subr.mxu0 0.0
    %1771 = vmatpush1.msra.mxu0 0.0
    %1772 = vmatprep.subr.mxu0 0.0
    %1773 = vmatpush1.msra.mxu0 0.0
    %1774 = vmatprep.subr.mxu0 0.0
    %1775 = vmatpush1.msra.mxu0 0.0
    %1776 = vmatprep.subr.mxu0 0.0
    %1777 = vmatpush1.msra.mxu0 0.0
    %1778 = vmatprep.subr.mxu0 0.0
    %1779 = vmatpush1.msra.mxu0 0.0
    %1780 = vmatprep.subr.mxu0 0.0
    %1781 = vmatpush1.msra.mxu0 0.0
    %1782 = vmatprep.subr.mxu0 0.0
    %1783 = vmatpush1.msra.mxu0 0.0
    %1784 = vmatprep.subr.mxu0 0.0
    %1785 = vmatpush1.msra.mxu0 0.0
    %1786 = vmatprep.subr.mxu0 0.0
    %1787 = vmatpush1.msra.mxu0 %v127
    %1788 = vmatprep.subr.mxu0 0.0
    %1789 = vmatpush1.msra.mxu0 %v126
    %1790 = vmatprep.subr.mxu0 0.0
    %1791 = vmatpush1.msra.mxu0 %v125
    %1792 = vmatprep.subr.mxu0 0.0
    %1793 = vmatpush1.msra.mxu0 %v124
    %1794 = vmatprep.subr.mxu0 0.0
    %1795 = vmatpush2.msra.mxu0 0.0
    %1796 = vmatprep.subr.mxu0 0.0
    %1797 = vmatpush2.msra.mxu0 0.0
    %1798 = vmatprep.subr.mxu0 0.0
    %1799 = vmatpush2.msra.mxu0 0.0
    %1800 = vmatprep.subr.mxu0 0.0
    %1801 = vmatpush2.msra.mxu0 0.0
    %1802 = vmatprep.subr.mxu0 0.0
    %1803 = vmatpush2.msra.mxu0 0.0
    %1804 = vmatprep.subr.mxu0 0.0
    %1805 = vmatpush2.msra.mxu0 0.0
    %1806 = vmatprep.subr.mxu0 0.0
    %1807 = vmatpush2.msra.mxu0 0.0
    %1808 = vmatprep.subr.mxu0 0.0
    %1809 = vmatpush2.msra.mxu0 0.0
    %1810 = vmatprep.subr.mxu0 0.0
    %1811 = vmatpush2.msra.mxu0 0.0
    %1812 = vmatprep.subr.mxu0 0.0
    %1813 = vmatpush2.msra.mxu0 0.0
    %1814 = vmatprep.subr.mxu0 0.0
    %1815 = vmatpush2.msra.mxu0 0.0
    %1816 = vmatprep.subr.mxu0 0.0
    %1817 = vmatpush2.msra.mxu0 0.0
    %1818 = vmatprep.subr.mxu0 0.0
    %1819 = vmatpush2.msra.mxu0 0.0
    %1820 = vmatprep.subr.mxu0 0.0
    %1821 = vmatpush2.msra.mxu0 0.0
    %1822 = vmatprep.subr.mxu0 0.0
    %1823 = vmatpush2.msra.mxu0 0.0
    %1824 = vmatprep.subr.mxu0 0.0
    %1825 = vmatpush2.msra.mxu0 0.0
    %1826 = vmatprep.mubr.f32.mxu0 0.0
    %1827 = vmatmul.mubr.f32.gmra.mxu0 %v1590
    %v1828 = vpop.f32.mrf.mxu0
    %v1829 = vadd.f32 0.0, %v1828
    %v1830 = vpop.f32.mrf.mxu0
    %1831 = vdwg.mxu0
    %v1832 = vadd.f32 %v122, %v1829
    %v1833 = vxor.u32 %v1832, 2147483648
    %v1834 = vmul.f32 %v1833, 1.442695
    %v1835 = vpow.pop %v1834
    %v1836 = vadd.f32 %v1835, 1.0
    %v1837 = vrcp.pop %v1836
    %v1838 = vmul.f32 1.0, %v1837
    %v1839 = vtanh.pop %v1832
    %v1840 = vmul.f32 %v1838, %v1580
    %1842 = vrot.lane.b32.xlu0 %v1839, 64
    %v1843 = vpop.permute.xlu0 %1842
    %v1845 = vmul.f32 %v1838, %v1843
    %1847 = vrot.lane.b32.xlu0 %v1845, 32
    %v1848 = vpop.permute.xlu0 %1847
    %v1850 = vadd.f32 %v1840, %v1848
    %v1851 = vtanh.pop %v1850
    %1853 = vrot.lane.b32.xlu0 %v1851, 64
    %v1854 = vpop.permute.xlu0 %1853
    %v1856 = vmul.f32 %v1838, %v1854
    %1858 = vrot.lane.b32.xlu0 %v1856, 32
    %v1859 = vpop.permute.xlu0 %1858
    %v1860 = vsel %vm137, %v1859, 0
    %1862 = vmatprep.subr.mxu0 0.0
    %1863 = vmatpush1.msra.mxu0 0.0
    %1864 = vmatprep.subr.mxu0 0.0
    %1865 = vmatpush1.msra.mxu0 0.0
    %1866 = vmatprep.subr.mxu0 0.0
    %1867 = vmatpush1.msra.mxu0 0.0
    %1868 = vmatprep.subr.mxu0 0.0
    %1869 = vmatpush1.msra.mxu0 0.0
    %1870 = vmatprep.subr.mxu0 0.0
    %1871 = vmatpush1.msra.mxu0 0.0
    %1872 = vmatprep.subr.mxu0 0.0
    %1873 = vmatpush1.msra.mxu0 0.0
    %1874 = vmatprep.subr.mxu0 0.0
    %1875 = vmatpush1.msra.mxu0 0.0
    %1876 = vmatprep.subr.mxu0 0.0
    %1877 = vmatpush1.msra.mxu0 0.0
    %1878 = vmatprep.subr.mxu0 0.0
    %1879 = vmatpush1.msra.mxu0 0.0
    %1880 = vmatprep.subr.mxu0 0.0
    %1881 = vmatpush1.msra.mxu0 0.0
    %1882 = vmatprep.subr.mxu0 0.0
    %1883 = vmatpush1.msra.mxu0 0.0
    %1884 = vmatprep.subr.mxu0 0.0
    %1885 = vmatpush1.msra.mxu0 0.0
    %1886 = vmatprep.subr.mxu0 0.0
    %1887 = vmatpush1.msra.mxu0 %v135
    %1888 = vmatprep.subr.mxu0 0.0
    %1889 = vmatpush1.msra.mxu0 %v134
    %1890 = vmatprep.subr.mxu0 0.0
    %1891 = vmatpush1.msra.mxu0 %v133
    %1892 = vmatprep.subr.mxu0 0.0
    %1893 = vmatpush1.msra.mxu0 %v132
    %1894 = vmatprep.subr.mxu0 0.0
    %1895 = vmatpush2.msra.mxu0 0.0
    %1896 = vmatprep.subr.mxu0 0.0
    %1897 = vmatpush2.msra.mxu0 0.0
    %1898 = vmatprep.subr.mxu0 0.0
    %1899 = vmatpush2.msra.mxu0 0.0
    %1900 = vmatprep.subr.mxu0 0.0
    %1901 = vmatpush2.msra.mxu0 0.0
    %1902 = vmatprep.subr.mxu0 0.0
    %1903 = vmatpush2.msra.mxu0 0.0
    %1904 = vmatprep.subr.mxu0 0.0
    %1905 = vmatpush2.msra.mxu0 0.0
    %1906 = vmatprep.subr.mxu0 0.0
    %1907 = vmatpush2.msra.mxu0 0.0
    %1908 = vmatprep.subr.mxu0 0.0
    %1909 = vmatpush2.msra.mxu0 0.0
    %1910 = vmatprep.subr.mxu0 0.0
    %1911 = vmatpush2.msra.mxu0 0.0
    %1912 = vmatprep.subr.mxu0 0.0
    %1913 = vmatpush2.msra.mxu0 0.0
    %1914 = vmatprep.subr.mxu0 0.0
    %1915 = vmatpush2.msra.mxu0 0.0
    %1916 = vmatprep.subr.mxu0 0.0
    %1917 = vmatpush2.msra.mxu0 0.0
    %1918 = vmatprep.subr.mxu0 0.0
    %1919 = vmatpush2.msra.mxu0 0.0
    %1920 = vmatprep.subr.mxu0 0.0
    %1921 = vmatpush2.msra.mxu0 0.0
    %1922 = vmatprep.subr.mxu0 0.0
    %1923 = vmatpush2.msra.mxu0 0.0
    %1924 = vmatprep.subr.mxu0 0.0
    %1925 = vmatpush2.msra.mxu0 0.0
    %1926 = vmatprep.mubr.f32.mxu0 0.0
    %1927 = vmatmul.mubr.f32.gmra.mxu0 %v1860
    %v1928 = vpop.f32.mrf.mxu0
    %v1929 = vadd.f32 %v240, %v1928
    %v1930 = vpop.f32.mrf.mxu0
    %1931 = vdwg.mxu0
    %1933 = vrot.lane.b32.xlu0 %v1761, 32
    %v1934 = vpop.permute.xlu0 %1933
    %v1935 = vsel %vm137, %v1934, 0
    %1937 = vmatprep.subr.mxu0 0.0
    %1938 = vmatpush1.msra.mxu0 0.0
    %1939 = vmatprep.subr.mxu0 0.0
    %1940 = vmatpush1.msra.mxu0 0.0
    %1941 = vmatprep.subr.mxu0 0.0
    %1942 = vmatpush1.msra.mxu0 0.0
    %1943 = vmatprep.subr.mxu0 0.0
    %1944 = vmatpush1.msra.mxu0 0.0
    %1945 = vmatprep.subr.mxu0 0.0
    %1946 = vmatpush1.msra.mxu0 0.0
    %1947 = vmatprep.subr.mxu0 0.0
    %1948 = vmatpush1.msra.mxu0 0.0
    %1949 = vmatprep.subr.mxu0 0.0
    %1950 = vmatpush1.msra.mxu0 0.0
    %1951 = vmatprep.subr.mxu0 0.0
    %1952 = vmatpush1.msra.mxu0 0.0
    %1953 = vmatprep.subr.mxu0 0.0
    %1954 = vmatpush1.msra.mxu0 0.0
    %1955 = vmatprep.subr.mxu0 0.0
    %1956 = vmatpush1.msra.mxu0 0.0
    %1957 = vmatprep.subr.mxu0 0.0
    %1958 = vmatpush1.msra.mxu0 0.0
    %1959 = vmatprep.subr.mxu0 0.0
    %1960 = vmatpush1.msra.mxu0 0.0
    %1961 = vmatprep.subr.mxu0 0.0
    %1962 = vmatpush1.msra.mxu0 %v131
    %1963 = vmatprep.subr.mxu0 0.0
    %1964 = vmatpush1.msra.mxu0 %v130
    %1965 = vmatprep.subr.mxu0 0.0
    %1966 = vmatpush1.msra.mxu0 %v129
    %1967 = vmatprep.subr.mxu0 0.0
    %1968 = vmatpush1.msra.mxu0 %v128
    %1969 = vmatprep.subr.mxu0 0.0
    %1970 = vmatpush2.msra.mxu0 0.0
    %1971 = vmatprep.subr.mxu0 0.0
    %1972 = vmatpush2.msra.mxu0 0.0
    %1973 = vmatprep.subr.mxu0 0.0
    %1974 = vmatpush2.msra.mxu0 0.0
    %1975 = vmatprep.subr.mxu0 0.0
    %1976 = vmatpush2.msra.mxu0 0.0
    %1977 = vmatprep.subr.mxu0 0.0
    %1978 = vmatpush2.msra.mxu0 0.0
    %1979 = vmatprep.subr.mxu0 0.0
    %1980 = vmatpush2.msra.mxu0 0.0
    %1981 = vmatprep.subr.mxu0 0.0
    %1982 = vmatpush2.msra.mxu0 0.0
    %1983 = vmatprep.subr.mxu0 0.0
    %1984 = vmatpush2.msra.mxu0 0.0
    %1985 = vmatprep.subr.mxu0 0.0
    %1986 = vmatpush2.msra.mxu0 0.0
    %1987 = vmatprep.subr.mxu0 0.0
    %1988 = vmatpush2.msra.mxu0 0.0
    %1989 = vmatprep.subr.mxu0 0.0
    %1990 = vmatpush2.msra.mxu0 0.0
    %1991 = vmatprep.subr.mxu0 0.0
    %1992 = vmatpush2.msra.mxu0 0.0
    %1993 = vmatprep.subr.mxu0 0.0
    %1994 = vmatpush2.msra.mxu0 0.0
    %1995 = vmatprep.subr.mxu0 0.0
    %1996 = vmatpush2.msra.mxu0 0.0
    %1997 = vmatprep.subr.mxu0 0.0
    %1998 = vmatpush2.msra.mxu0 0.0
    %1999 = vmatprep.subr.mxu0 0.0
    %2000 = vmatpush2.msra.mxu0 0.0
    %2001 = vmatprep.mubr.f32.mxu0 0.0
    %2002 = vmatmul.mubr.f32.gmra.mxu0 %v1935
    %v2003 = vpop.f32.mrf.mxu0
    %v2004 = vadd.f32 0.0, %v2003
    %v2005 = vpop.f32.mrf.mxu0
    %2006 = vdwg.mxu0
    %v2007 = vadd.f32 %v1929, %v2004
    %v2008 = vxor.u32 %v2007, 2147483648
    %v2009 = vmul.f32 %v2008, 1.442695
    %v2010 = vpow.pop %v2009
    %v2011 = vadd.f32 %v2010, 1.0
    %v2012 = vrcp.pop %v2011
    %v2013 = vmul.f32 1.0, %v2012
    %v2014 = vtanh.pop %v2007
    %v2015 = vmul.f32 %v2013, %v1755
    %2017 = vrot.lane.b32.xlu0 %v2014, 64
    %v2018 = vpop.permute.xlu0 %2017
    %v2020 = vmul.f32 %v2013, %v2018
    %2022 = vrot.lane.b32.xlu0 %v2020, 32
    %v2023 = vpop.permute.xlu0 %2022
    %v2025 = vadd.f32 %v2015, %v2023
    %v2026 = vtanh.pop %v2025
    %2028 = vrot.lane.b32.xlu0 %v2026, 64
    %v2029 = vpop.permute.xlu0 %2028
    %v2031 = vmul.f32 %v2013, %v2029
    %2032 = vmatprep.subr.mxu0 0.0
    %2033 = vmatpush1.msra.mxu0 0.0
    %2034 = vmatprep.subr.mxu0 0.0
    %2035 = vmatpush1.msra.mxu0 0.0
    %2036 = vmatprep.subr.mxu0 0.0
    %2037 = vmatpush1.msra.mxu0 0.0
    %2038 = vmatprep.subr.mxu0 0.0
    %2039 = vmatpush1.msra.mxu0 0.0
    %2040 = vmatprep.subr.mxu0 0.0
    %2041 = vmatpush1.msra.mxu0 0.0
    %2042 = vmatprep.subr.mxu0 0.0
    %2043 = vmatpush1.msra.mxu0 0.0
    %2044 = vmatprep.subr.mxu0 0.0
    %2045 = vmatpush1.msra.mxu0 0.0
    %2046 = vmatprep.subr.mxu0 0.0
    %2047 = vmatpush1.msra.mxu0 0.0
    %2048 = vmatprep.subr.mxu0 0.0
    %2049 = vmatpush1.msra.mxu0 0.0
    %2050 = vmatprep.subr.mxu0 0.0
    %2051 = vmatpush1.msra.mxu0 0.0
    %2052 = vmatprep.subr.mxu0 0.0
    %2053 = vmatpush1.msra.mxu0 0.0
    %2054 = vmatprep.subr.mxu0 0.0
    %2055 = vmatpush1.msra.mxu0 0.0
    %2056 = vmatprep.subr.mxu0 0.0
    %2057 = vmatpush1.msra.mxu0 %v127
    %2058 = vmatprep.subr.mxu0 0.0
    %2059 = vmatpush1.msra.mxu0 %v126
    %2060 = vmatprep.subr.mxu0 0.0
    %2061 = vmatpush1.msra.mxu0 %v125
    %2062 = vmatprep.subr.mxu0 0.0
    %2063 = vmatpush1.msra.mxu0 %v124
    %2064 = vmatprep.subr.mxu0 0.0
    %2065 = vmatpush2.msra.mxu0 0.0
    %2066 = vmatprep.subr.mxu0 0.0
    %2067 = vmatpush2.msra.mxu0 0.0
    %2068 = vmatprep.subr.mxu0 0.0
    %2069 = vmatpush2.msra.mxu0 0.0
    %2070 = vmatprep.subr.mxu0 0.0
    %2071 = vmatpush2.msra.mxu0 0.0
    %2072 = vmatprep.subr.mxu0 0.0
    %2073 = vmatpush2.msra.mxu0 0.0
    %2074 = vmatprep.subr.mxu0 0.0
    %2075 = vmatpush2.msra.mxu0 0.0
    %2076 = vmatprep.subr.mxu0 0.0
    %2077 = vmatpush2.msra.mxu0 0.0
    %2078 = vmatprep.subr.mxu0 0.0
    %2079 = vmatpush2.msra.mxu0 0.0
    %2080 = vmatprep.subr.mxu0 0.0
    %2081 = vmatpush2.msra.mxu0 0.0
    %2082 = vmatprep.subr.mxu0 0.0
    %2083 = vmatpush2.msra.mxu0 0.0
    %2084 = vmatprep.subr.mxu0 0.0
    %2085 = vmatpush2.msra.mxu0 0.0
    %2086 = vmatprep.subr.mxu0 0.0
    %2087 = vmatpush2.msra.mxu0 0.0
    %2088 = vmatprep.subr.mxu0 0.0
    %2089 = vmatpush2.msra.mxu0 0.0
    %2090 = vmatprep.subr.mxu0 0.0
    %2091 = vmatpush2.msra.mxu0 0.0
    %2092 = vmatprep.subr.mxu0 0.0
    %2093 = vmatpush2.msra.mxu0 0.0
    %2094 = vmatprep.subr.mxu0 0.0
    %2095 = vmatpush2.msra.mxu0 0.0
    %2096 = vmatprep.mubr.f32.mxu0 0.0
    %2097 = vmatmul.mubr.f32.gmra.mxu0 %v1860
    %v2098 = vpop.f32.mrf.mxu0
    %v2099 = vadd.f32 0.0, %v2098
    %v2100 = vpop.f32.mrf.mxu0
    %2101 = vdwg.mxu0
    %v2102 = vadd.f32 %v123, %v2099
    %v2103 = vxor.u32 %v2102, 2147483648
    %v2104 = vmul.f32 %v2103, 1.442695
    %v2105 = vpow.pop %v2104
    %v2106 = vadd.f32 %v2105, 1.0
    %v2107 = vrcp.pop %v2106
    %v2108 = vmul.f32 1.0, %v2107
    %v2109 = vtanh.pop %v2102
    %v2110 = vmul.f32 %v2108, %v1850
    %2112 = vrot.lane.b32.xlu0 %v2109, 64
    %v2113 = vpop.permute.xlu0 %2112
    %v2115 = vmul.f32 %v2108, %v2113
    %2117 = vrot.lane.b32.xlu0 %v2115, 32
    %v2118 = vpop.permute.xlu0 %2117
    %v2120 = vadd.f32 %v2110, %v2118
    %v2121 = vtanh.pop %v2120
    %2123 = vrot.lane.b32.xlu0 %v2121, 64
    %v2124 = vpop.permute.xlu0 %2123
    %v2126 = vmul.f32 %v2108, %v2124
    %2128 = vrot.lane.b32.xlu0 %v2126, 32
    %v2129 = vpop.permute.xlu0 %2128
    %v2130 = vsel %vm137, %v2129, 0
    %2132 = vmatprep.subr.mxu0 0.0
    %2133 = vmatpush1.msra.mxu0 0.0
    %2134 = vmatprep.subr.mxu0 0.0
    %2135 = vmatpush1.msra.mxu0 0.0
    %2136 = vmatprep.subr.mxu0 0.0
    %2137 = vmatpush1.msra.mxu0 0.0
    %2138 = vmatprep.subr.mxu0 0.0
    %2139 = vmatpush1.msra.mxu0 0.0
    %2140 = vmatprep.subr.mxu0 0.0
    %2141 = vmatpush1.msra.mxu0 0.0
    %2142 = vmatprep.subr.mxu0 0.0
    %2143 = vmatpush1.msra.mxu0 0.0
    %2144 = vmatprep.subr.mxu0 0.0
    %2145 = vmatpush1.msra.mxu0 0.0
    %2146 = vmatprep.subr.mxu0 0.0
    %2147 = vmatpush1.msra.mxu0 0.0
    %2148 = vmatprep.subr.mxu0 0.0
    %2149 = vmatpush1.msra.mxu0 0.0
    %2150 = vmatprep.subr.mxu0 0.0
    %2151 = vmatpush1.msra.mxu0 0.0
    %2152 = vmatprep.subr.mxu0 0.0
    %2153 = vmatpush1.msra.mxu0 0.0
    %2154 = vmatprep.subr.mxu0 0.0
    %2155 = vmatpush1.msra.mxu0 0.0
    %2156 = vmatprep.subr.mxu0 0.0
    %2157 = vmatpush1.msra.mxu0 %v135
    %2158 = vmatprep.subr.mxu0 0.0
    %2159 = vmatpush1.msra.mxu0 %v134
    %2160 = vmatprep.subr.mxu0 0.0
    %2161 = vmatpush1.msra.mxu0 %v133
    %2162 = vmatprep.subr.mxu0 0.0
    %2163 = vmatpush1.msra.mxu0 %v132
    %2164 = vmatprep.subr.mxu0 0.0
    %2165 = vmatpush2.msra.mxu0 0.0
    %2166 = vmatprep.subr.mxu0 0.0
    %2167 = vmatpush2.msra.mxu0 0.0
    %2168 = vmatprep.subr.mxu0 0.0
    %2169 = vmatpush2.msra.mxu0 0.0
    %2170 = vmatprep.subr.mxu0 0.0
    %2171 = vmatpush2.msra.mxu0 0.0
    %2172 = vmatprep.subr.mxu0 0.0
    %2173 = vmatpush2.msra.mxu0 0.0
    %2174 = vmatprep.subr.mxu0 0.0
    %2175 = vmatpush2.msra.mxu0 0.0
    %2176 = vmatprep.subr.mxu0 0.0
    %2177 = vmatpush2.msra.mxu0 0.0
    %2178 = vmatprep.subr.mxu0 0.0
    %2179 = vmatpush2.msra.mxu0 0.0
    %2180 = vmatprep.subr.mxu0 0.0
    %2181 = vmatpush2.msra.mxu0 0.0
    %2182 = vmatprep.subr.mxu0 0.0
    %2183 = vmatpush2.msra.mxu0 0.0
    %2184 = vmatprep.subr.mxu0 0.0
    %2185 = vmatpush2.msra.mxu0 0.0
    %2186 = vmatprep.subr.mxu0 0.0
    %2187 = vmatpush2.msra.mxu0 0.0
    %2188 = vmatprep.subr.mxu0 0.0
    %2189 = vmatpush2.msra.mxu0 0.0
    %2190 = vmatprep.subr.mxu0 0.0
    %2191 = vmatpush2.msra.mxu0 0.0
    %2192 = vmatprep.subr.mxu0 0.0
    %2193 = vmatpush2.msra.mxu0 0.0
    %2194 = vmatprep.subr.mxu0 0.0
    %2195 = vmatpush2.msra.mxu0 0.0
    %2196 = vmatprep.mubr.f32.mxu0 0.0
    %2197 = vmatmul.mubr.f32.gmra.mxu0 %v2130
    %v2198 = vpop.f32.mrf.mxu0
    %v2199 = vadd.f32 %v240, %v2198
    %v2200 = vpop.f32.mrf.mxu0
    %2201 = vdwg.mxu0
    %2203 = vrot.lane.b32.xlu0 %v2031, 32
    %v2204 = vpop.permute.xlu0 %2203
    %v2205 = vsel %vm137, %v2204, 0
    %2207 = vmatprep.subr.mxu0 0.0
    %2208 = vmatpush1.msra.mxu0 0.0
    %2209 = vmatprep.subr.mxu0 0.0
    %2210 = vmatpush1.msra.mxu0 0.0
    %2211 = vmatprep.subr.mxu0 0.0
    %2212 = vmatpush1.msra.mxu0 0.0
    %2213 = vmatprep.subr.mxu0 0.0
    %2214 = vmatpush1.msra.mxu0 0.0
    %2215 = vmatprep.subr.mxu0 0.0
    %2216 = vmatpush1.msra.mxu0 0.0
    %2217 = vmatprep.subr.mxu0 0.0
    %2218 = vmatpush1.msra.mxu0 0.0
    %2219 = vmatprep.subr.mxu0 0.0
    %2220 = vmatpush1.msra.mxu0 0.0
    %2221 = vmatprep.subr.mxu0 0.0
    %2222 = vmatpush1.msra.mxu0 0.0
    %2223 = vmatprep.subr.mxu0 0.0
    %2224 = vmatpush1.msra.mxu0 0.0
    %2225 = vmatprep.subr.mxu0 0.0
    %2226 = vmatpush1.msra.mxu0 0.0
    %2227 = vmatprep.subr.mxu0 0.0
    %2228 = vmatpush1.msra.mxu0 0.0
    %2229 = vmatprep.subr.mxu0 0.0
    %2230 = vmatpush1.msra.mxu0 0.0
    %2231 = vmatprep.subr.mxu0 0.0
    %2232 = vmatpush1.msra.mxu0 %v131
    %2233 = vmatprep.subr.mxu0 0.0
    %2234 = vmatpush1.msra.mxu0 %v130
    %2235 = vmatprep.subr.mxu0 0.0
    %2236 = vmatpush1.msra.mxu0 %v129
    %2237 = vmatprep.subr.mxu0 0.0
    %2238 = vmatpush1.msra.mxu0 %v128
    %2239 = vmatprep.subr.mxu0 0.0
    %2240 = vmatpush2.msra.mxu0 0.0
    %2241 = vmatprep.subr.mxu0 0.0
    %2242 = vmatpush2.msra.mxu0 0.0
    %2243 = vmatprep.subr.mxu0 0.0
    %2244 = vmatpush2.msra.mxu0 0.0
    %2245 = vmatprep.subr.mxu0 0.0
    %2246 = vmatpush2.msra.mxu0 0.0
    %2247 = vmatprep.subr.mxu0 0.0
    %2248 = vmatpush2.msra.mxu0 0.0
    %2249 = vmatprep.subr.mxu0 0.0
    %2250 = vmatpush2.msra.mxu0 0.0
    %2251 = vmatprep.subr.mxu0 0.0
    %2252 = vmatpush2.msra.mxu0 0.0
    %2253 = vmatprep.subr.mxu0 0.0
    %2254 = vmatpush2.msra.mxu0 0.0
    %2255 = vmatprep.subr.mxu0 0.0
    %2256 = vmatpush2.msra.mxu0 0.0
    %2257 = vmatprep.subr.mxu0 0.0
    %2258 = vmatpush2.msra.mxu0 0.0
    %2259 = vmatprep.subr.mxu0 0.0
    %2260 = vmatpush2.msra.mxu0 0.0
    %2261 = vmatprep.subr.mxu0 0.0
    %2262 = vmatpush2.msra.mxu0 0.0
    %2263 = vmatprep.subr.mxu0 0.0
    %2264 = vmatpush2.msra.mxu0 0.0
    %2265 = vmatprep.subr.mxu0 0.0
    %2266 = vmatpush2.msra.mxu0 0.0
    %2267 = vmatprep.subr.mxu0 0.0
    %2268 = vmatpush2.msra.mxu0 0.0
    %2269 = vmatprep.subr.mxu0 0.0
    %2270 = vmatpush2.msra.mxu0 0.0
    %2271 = vmatprep.mubr.f32.mxu0 0.0
    %2272 = vmatmul.mubr.f32.gmra.mxu0 %v2205
    %v2273 = vpop.f32.mrf.mxu0
    %v2274 = vadd.f32 0.0, %v2273
    %v2275 = vpop.f32.mrf.mxu0
    %2276 = vdwg.mxu0
    %v2277 = vadd.f32 %v2199, %v2274
    %v2278 = vxor.u32 %v2277, 2147483648
    %v2279 = vmul.f32 %v2278, 1.442695
    %v2280 = vpow.pop %v2279
    %v2281 = vadd.f32 %v2280, 1.0
    %v2282 = vrcp.pop %v2281
    %v2283 = vmul.f32 1.0, %v2282
    %v2284 = vtanh.pop %v2277
    %v2285 = vmul.f32 %v2283, %v2025
    %2287 = vrot.lane.b32.xlu0 %v2284, 64
    %v2288 = vpop.permute.xlu0 %2287
    %v2290 = vmul.f32 %v2283, %v2288
    %2292 = vrot.lane.b32.xlu0 %v2290, 32
    %v2293 = vpop.permute.xlu0 %2292
    %v2295 = vadd.f32 %v2285, %v2293
    %v2296 = vtanh.pop %v2295
    %2298 = vrot.lane.b32.xlu0 %v2296, 64
    %v2299 = vpop.permute.xlu0 %2298
    %v2301 = vmul.f32 %v2283, %v2299
    %v2302 = vld [vmem:[#allocation2] sm:$0xff]
    %v2303 = vld [vmem:[#allocation2 + $0x8] sm:$0xff]
    %v2304 = vld [vmem:[#allocation2 + $0x10] sm:$0xff]
    %v2305 = vld [vmem:[#allocation2 + $0x18] sm:$0xff]
    %v2306 = vld [vmem:[%s8] sm:$0x1]
    %v2308 = vlaneseq
    %v2309 = vshrl.u32 %v2308, 7
    %v2310 = vsub.s32 0, %v2309
    %v2311 = vrot.slane %v2306, %v2310
    %2314 = vrot.lane.b32.xlu0 %v2301, 32
    %v2315 = vpop.permute.xlu0 %2314
    %v2316 = vsel %vm137, %v2315, 0
    %2318 = vmatprep.subr.mxu0 0.0
    %2319 = vmatpush1.msra.mxu0 0.0
    %2320 = vmatprep.subr.mxu0 0.0
    %2321 = vmatpush1.msra.mxu0 0.0
    %2322 = vmatprep.subr.mxu0 0.0
    %2323 = vmatpush1.msra.mxu0 0.0
    %2324 = vmatprep.subr.mxu0 0.0
    %2325 = vmatpush1.msra.mxu0 0.0
    %2326 = vmatprep.subr.mxu0 0.0
    %2327 = vmatpush1.msra.mxu0 0.0
    %2328 = vmatprep.subr.mxu0 0.0
    %2329 = vmatpush1.msra.mxu0 0.0
    %2330 = vmatprep.subr.mxu0 0.0
    %2331 = vmatpush1.msra.mxu0 0.0
    %2332 = vmatprep.subr.mxu0 0.0
    %2333 = vmatpush1.msra.mxu0 0.0
    %2334 = vmatprep.subr.mxu0 0.0
    %2335 = vmatpush1.msra.mxu0 0.0
    %2336 = vmatprep.subr.mxu0 0.0
    %2337 = vmatpush1.msra.mxu0 0.0
    %2338 = vmatprep.subr.mxu0 0.0
    %2339 = vmatpush1.msra.mxu0 0.0
    %2340 = vmatprep.subr.mxu0 0.0
    %2341 = vmatpush1.msra.mxu0 0.0
    %2342 = vmatprep.subr.mxu0 0.0
    %2343 = vmatpush1.msra.mxu0 %v2305
    %2344 = vmatprep.subr.mxu0 0.0
    %2345 = vmatpush1.msra.mxu0 %v2304
    %2346 = vmatprep.subr.mxu0 0.0
    %2347 = vmatpush1.msra.mxu0 %v2303
    %2348 = vmatprep.subr.mxu0 0.0
    %2349 = vmatpush1.msra.mxu0 %v2302
    %2350 = vmatprep.subr.mxu0 0.0
    %2351 = vmatpush2.msra.mxu0 0.0
    %2352 = vmatprep.subr.mxu0 0.0
    %2353 = vmatpush2.msra.mxu0 0.0
    %2354 = vmatprep.subr.mxu0 0.0
    %2355 = vmatpush2.msra.mxu0 0.0
    %2356 = vmatprep.subr.mxu0 0.0
    %2357 = vmatpush2.msra.mxu0 0.0
    %2358 = vmatprep.subr.mxu0 0.0
    %2359 = vmatpush2.msra.mxu0 0.0
    %2360 = vmatprep.subr.mxu0 0.0
    %2361 = vmatpush2.msra.mxu0 0.0
    %2362 = vmatprep.subr.mxu0 0.0
    %2363 = vmatpush2.msra.mxu0 0.0
    %2364 = vmatprep.subr.mxu0 0.0
    %2365 = vmatpush2.msra.mxu0 0.0
    %2366 = vmatprep.subr.mxu0 0.0
    %2367 = vmatpush2.msra.mxu0 0.0
    %2368 = vmatprep.subr.mxu0 0.0
    %2369 = vmatpush2.msra.mxu0 0.0
    %2370 = vmatprep.subr.mxu0 0.0
    %2371 = vmatpush2.msra.mxu0 0.0
    %2372 = vmatprep.subr.mxu0 0.0
    %2373 = vmatpush2.msra.mxu0 0.0
    %2374 = vmatprep.subr.mxu0 0.0
    %2375 = vmatpush2.msra.mxu0 0.0
    %2376 = vmatprep.subr.mxu0 0.0
    %2377 = vmatpush2.msra.mxu0 0.0
    %2378 = vmatprep.subr.mxu0 0.0
    %2379 = vmatpush2.msra.mxu0 0.0
    %2380 = vmatprep.subr.mxu0 0.0
    %2381 = vmatpush2.msra.mxu0 0.0
    %2382 = vmatprep.mubr.f32.mxu0 0.0
    %2383 = vmatmul.mubr.f32.gmra.mxu0 %v2316
    %v2384 = vpop.f32.mrf.mxu0
    %v2385 = vadd.f32 %v2311, %v2384
    %v2386 = vpop.f32.mrf.mxu0
    %2387 = vdwg.mxu0
    %2388 = vst [vmem:[%s9] sm:$0xff] %v2385
    // Predicated region
    $region42: #{_forward_impl.1} parent=1 // pred_check
      _
    $region43: #{_forward_impl.1} parent=1 // pred_check_branch
      %2390 = sbr.rel (0) target = $region45
    $region44: #{_forward_impl.1} parent=1 // pred_region
      _
    $region45: #{_forward_impl.1} parent=1 // pred_fallthru
      _
    // Predicated region
    $region46: #{_forward_impl.1} parent=1 // pred_check
      _
    $region47: #{_forward_impl.1} parent=1 // pred_check_branch
      %2392 = sbr.rel (0) target = $region49
    $region48: #{_forward_impl.1} parent=1 // pred_region
      _
    $region49: #{_forward_impl.1} parent=1 // pred_fallthru
      _
    %2393 = vsyncpa [#allocation3], 1

</llo_original>
